<compile_context>
chip_gen: v7x
topology: tpu7x:2x2x1
jax: 0.10.0
libtpu: 0.0.40
codegen_flags: <defaults>
</compile_context>

<pallas_src>
import math

import jax
import jax.numpy as jnp
from jax import lax
from jax.experimental import pallas as pl
from jax.experimental.pallas import tpu as pltpu


# ----------------------------------------------------------------------------
# Fused kernel: encoder LSTM -> decoder LSTM -> Linear head (single invocation)
# ----------------------------------------------------------------------------
def _seq2seq_kernel(x1_ref, x2_ref, wih_e_ref, whh_e_ref, b_e_ref,
                    wih_d_ref, whh_d_ref, b_d_ref, h0_ref, c0_ref,
                    wl_ref, bl_ref, y_ref):
    B, H = h0_ref.shape
    S1 = x1_ref.shape[0] // B
    S2 = x2_ref.shape[0] // B

    # Hoisted recurrent weights (bf16): loaded once, live in vregs for every step.
    whh_e = whh_e_ref[...]                                       # (H, 4H) bf16
    whh_d = whh_d_ref[...]                                       # (H, 4H) bf16

    # Non-recurrent input projections, batched over all timesteps: one lane-dense bf16
    # MXU matmul per LSTM (f32 accumulation), instead of one tiny matmul per step.
    xg_e = (jnp.dot(x1_ref[...].astype(jnp.bfloat16), wih_e_ref[...],
                    preferred_element_type=jnp.float32)
            + b_e_ref[...])                                      # (S1*B, 4H) f32
    xg_d = (jnp.dot(x2_ref[...].astype(jnp.bfloat16), wih_d_ref[...],
                    preferred_element_type=jnp.float32)
            + b_d_ref[...])                                      # (S2*B, 4H) f32

    def cell(xg_t, h, c, whh):
        # PyTorch LSTM gate ordering: i, f, g, o.
        gates = xg_t + jnp.dot(h.astype(jnp.bfloat16), whh,
                               preferred_element_type=jnp.float32)   # (B, 4H) f32
        # Activate the WHOLE (B, 4H) vreg once per nonlinearity (2 EUP pushes/step
        # instead of 5 partial-vreg pushes), then take static lane slices.
        sig = jax.nn.sigmoid(gates)
        tnh = jnp.tanh(gates)
        i = sig[:, 0:H]
        f = sig[:, H:2 * H]
        g = tnh[:, 2 * H:3 * H]
        o = sig[:, 3 * H:4 * H]
        c_new = f * c + i * g
        h_new = o * jnp.tanh(c_new)
        return h_new, c_new

    h = h0_ref[...]                                              # (B, H) f32
    c = c0_ref[...]

    # Encoder recurrence (fully unrolled; small static trip count).
    for t in range(S1):
        h, c = cell(xg_e[t * B:(t + 1) * B, :], h, c, whh_e)

    # Decoder recurrence; keep every hidden state in vregs (no VMEM scratch stores).
    hs = []
    for t in range(S2):
        h, c = cell(xg_d[t * B:(t + 1) * B, :], h, c, whh_d)
        hs.append(h)
    hs = jnp.concatenate(hs, axis=0)                             # (S2*B, H) f32

    # Linear(H -> 4) head, zero-padded to 128 output lanes for an unmasked lane-dense
    # store; cols 0,1 -> tanh, cols 2,3 -> sigmoid (padding cols are sliced off outside).
    z = (jnp.dot(hs.astype(jnp.bfloat16), wl_ref[...],
                 preferred_element_type=jnp.float32)
         + bl_ref[...])                                          # (S2*B, 128) f32
    col = lax.broadcasted_iota(jnp.int32, z.shape, 1)
    y_ref[...] = jnp.where(col < 2, jnp.tanh(z), jax.nn.sigmoid(z)).astype(y_ref.dtype)


def _vmem_spec():
    return pl.BlockSpec(memory_space=pltpu.MemorySpace.VMEM)


@jax.jit
def seq2seq_forward(x1f, x2f, wih_e_t, whh_e_t, b_e, wih_d_t, whh_d_t, b_d,
                    h0, c0, wl_pad, bl_pad):
    """x1f: (S1*B, I) encoder input; x2f: (S2*B, I) decoder input. Returns (S2*B, 4)."""
    S2B = x2f.shape[0]
    y = pl.pallas_call(
        _seq2seq_kernel,
        out_shape=jax.ShapeDtypeStruct((S2B, 128), jnp.float32),
        in_specs=[_vmem_spec() for _ in range(12)],
        out_specs=_vmem_spec(),
        compiler_params=pltpu.CompilerParams(vmem_limit_bytes=32 * 1024 * 1024),
    )(x1f, x2f, wih_e_t, whh_e_t, b_e, wih_d_t, whh_d_t, b_d, h0, c0, wl_pad, bl_pad)
    return y[:, :4]


# ----------------------------------------------------------------------------
# Full Model (train mode)
# ----------------------------------------------------------------------------
class PallasModel:
    def __init__(self, en_input_size, batch_size, en_hidden_size, de_hidden_size,
                 en_layers=1, de_layers=1, en_dropout=0.0, de_dropout=0.0, key=None):
        assert en_layers == 1 and de_layers == 1, "kernel supports n_layers=1"
        assert en_hidden_size == de_hidden_size
        del en_dropout, de_dropout  # no-op for single-layer LSTMs (matches PyTorch)
        self.B = batch_size
        self.I = en_input_size
        self.He = en_hidden_size
        self.Hd = de_hidden_size

        key = jax.random.PRNGKey(0) if key is None else key
        ks = jax.random.split(key, 12)

        def unif(k, shape, bound):
            return jax.random.uniform(k, shape, jnp.float32, -bound, bound)

        ke = 1.0 / math.sqrt(en_hidden_size)
        kd = 1.0 / math.sqrt(de_hidden_size)
        # Encoder LSTM params (PyTorch layout: (4H, I), (4H, H), (4H,)) -- kept in f32.
        self.enc_wih = unif(ks[0], (4 * en_hidden_size, en_input_size), ke)
        self.enc_whh = unif(ks[1], (4 * en_hidden_size, en_hidden_size), ke)
        self.enc_bih = unif(ks[2], (4 * en_hidden_size,), ke)
        self.enc_bhh = unif(ks[3], (4 * en_hidden_size,), ke)
        # Decoder LSTM params
        self.dec_wih = unif(ks[4], (4 * de_hidden_size, en_input_size), kd)
        self.dec_whh = unif(ks[5], (4 * de_hidden_size, de_hidden_size), kd)
        self.dec_bih = unif(ks[6], (4 * de_hidden_size,), kd)
        self.dec_bhh = unif(ks[7], (4 * de_hidden_size,), kd)
        # Linear(hidden -> 4)
        kl = 1.0 / math.sqrt(de_hidden_size)
        self.lin_w = unif(ks[8], (4, de_hidden_size), kl)
        self.lin_b = unif(ks[9], (4,), kl)
        # Deterministic replacement for EncoderRNNmodel.init_hidden() torch.randn
        self.enc_h0 = jax.random.normal(ks[10], (batch_size, en_hidden_size), jnp.float32)
        self.enc_c0 = jax.random.normal(ks[11], (batch_size, en_hidden_size), jnp.float32)

        # Kernel-layout params, prepped once at init:
        #  * transposed weights cast to bf16 (MXU operands; accumulation stays f32)
        #  * biases pre-summed, kept f32
        #  * head weight zero-padded to 128 output lanes for a lane-dense output store.
        self.enc_wih_t = self.enc_wih.T.astype(jnp.bfloat16)            # (I, 4H)
        self.enc_whh_t = self.enc_whh.T.astype(jnp.bfloat16)            # (H, 4H)
        self.enc_b = (self.enc_bih + self.enc_bhh).reshape(1, -1)       # (1, 4H) f32
        self.dec_wih_t = self.dec_wih.T.astype(jnp.bfloat16)
        self.dec_whh_t = self.dec_whh.T.astype(jnp.bfloat16)
        self.dec_b = (self.dec_bih + self.dec_bhh).reshape(1, -1)
        self.lin_w_pad = jnp.zeros((de_hidden_size, 128), jnp.bfloat16).at[:, :4].set(
            self.lin_w.T.astype(jnp.bfloat16))                          # (H, 128)
        self.lin_b_pad = jnp.zeros((1, 128), jnp.float32).at[0, :4].set(self.lin_b)

    def forward(self, input_tensor, input_tensor2):
        """Train mode. input_tensor: (S1, B, I); input_tensor2 reshaped to (-1, B, I)."""
        S1, B, I = input_tensor.shape
        x1f = input_tensor.reshape(S1 * B, I)
        x2f = input_tensor2.reshape(-1, self.B, self.I).reshape(-1, self.I)
        return seq2seq_forward(x1f, x2f,
                               self.enc_wih_t, self.enc_whh_t, self.enc_b,
                               self.dec_wih_t, self.dec_whh_t, self.dec_b,
                               self.enc_h0, self.enc_c0,
                               self.lin_w_pad, self.lin_b_pad)


# ----------------------------------------------------------------------------
# Pure-JAX references for verification.
#   mm_dtype=float32  : the original full-f32 semantics of the PyTorch module.
#   mm_dtype=bfloat16 : matmul operands rounded to bf16 with f32 accumulation, i.e. the
#                       same precision policy the kernel uses on the MXU -> tight check.
# ----------------------------------------------------------------------------
def _mm(a, b, mm_dtype):
    return jnp.dot(a.astype(mm_dtype), b.astype(mm_dtype),
                   preferred_element_type=jnp.float32)


def _lstm_ref(x, wih, whh, bih, bhh, h0, c0, mm_dtype):
    H = h0.shape[-1]

    def step(carry, x_t):
        h, c = carry
        gates = _mm(x_t, wih.T, mm_dtype) + bih + _mm(h, whh.T, mm_dtype) + bhh
        i = jax.nn.sigmoid(gates[:, 0:H])
        f = jax.nn.sigmoid(gates[:, H:2 * H])
        g = jnp.tanh(gates[:, 2 * H:3 * H])
        o = jax.nn.sigmoid(gates[:, 3 * H:4 * H])
        c = f * c + i * g
        h = o * jnp.tanh(c)
        return (h, c), h

    (hN, cN), hs = lax.scan(step, (h0, c0), x)
    return hs, hN, cN


def _model_ref(m, x1, x2, mm_dtype=jnp.float32):
    _, hN, cN = _lstm_ref(x1, m.enc_wih, m.enc_whh, m.enc_bih, m.enc_bhh,
                          m.enc_h0, m.enc_c0, mm_dtype)
    x2 = x2.reshape(-1, m.B, m.I)
    hs, _, _ = _lstm_ref(x2, m.dec_wih, m.dec_whh, m.dec_bih, m.dec_bhh, hN, cN, mm_dtype)
    z = _mm(hs.reshape(-1, m.Hd), m.lin_w.T, mm_dtype) + m.lin_b
    return jnp.concatenate([jnp.tanh(z[:, :2]), jax.nn.sigmoid(z[:, 2:])], axis=-1)


if __name__ == "__main__":
    B, I, H = 2, 4, 32         # batch, en_input_size(=4), hidden (en == de)
    S1, S2 = 8, 6              # encoder / decoder sequence lengths

    key = jax.random.PRNGKey(0)
    k1, k2, k3 = jax.random.split(key, 3)

    model = PallasModel(en_input_size=I, batch_size=B,
                        en_hidden_size=H, de_hidden_size=H,
                        en_layers=1, de_layers=1, key=k1)

    x1 = jax.random.normal(k2, (S1, B, I), jnp.float32)   # encoder input (seq, batch, feat)
    x2 = jax.random.normal(k3, (S2, B, I), jnp.float32)   # decoder input (seq, batch, feat)

    out = model.forward(x1, x2)
    out = jax.block_until_ready(out)
    assert out.shape == (S2 * B, 4), out.shape

    # Tight check against a reference using the same bf16-operand / f32-accumulate matmuls.
    ref_bf16 = _model_ref(model, x1, x2, mm_dtype=jnp.bfloat16)
    err_b = float(jnp.max(jnp.abs(out - ref_bf16)))
    assert jnp.allclose(out, ref_bf16, atol=5e-3, rtol=5e-3), err_b

    # Loose check against the full-f32 reference (tolerance relaxed because the kernel
    # uses bf16 MXU operands per the perf review; gate/elementwise math is still f32).
    ref_f32 = _model_ref(model, x1, x2, mm_dtype=jnp.float32)
    err_f = float(jnp.max(jnp.abs(out - ref_f32)))
    assert jnp.allclose(out, ref_f32, atol=5e-2, rtol=5e-2), err_f

    print("KERNEL_OK")
</pallas_src>

<mosaic_0001>
module attributes {stable_mosaic.version = 11 : i64} {
  func.func @_seq2seq_kernel(%arg0: memref<16x4xf32, #tpu.memory_space<vmem>>, %arg1: memref<12x4xf32, #tpu.memory_space<vmem>>, %arg2: memref<4x128xbf16, #tpu.memory_space<vmem>>, %arg3: memref<32x128xbf16, #tpu.memory_space<vmem>>, %arg4: memref<1x128xf32, #tpu.memory_space<vmem>>, %arg5: memref<4x128xbf16, #tpu.memory_space<vmem>>, %arg6: memref<32x128xbf16, #tpu.memory_space<vmem>>, %arg7: memref<1x128xf32, #tpu.memory_space<vmem>>, %arg8: memref<2x32xf32, #tpu.memory_space<vmem>>, %arg9: memref<2x32xf32, #tpu.memory_space<vmem>>, %arg10: memref<32x128xbf16, #tpu.memory_space<vmem>>, %arg11: memref<1x128xf32, #tpu.memory_space<vmem>>, %arg12: memref<12x128xf32, #tpu.memory_space<vmem>>) attributes {dimension_semantics = [], scalar_prefetch = 0 : i64, scratch_operands = 0 : i64, tpu.core_type = #tpu.core_type<tc>} {
    %c0 = arith.constant 0 : index
    %c0_0 = arith.constant 0 : index
    %0 = vector.load %arg3[%c0, %c0_0] : memref<32x128xbf16, #tpu.memory_space<vmem>>, vector<32x128xbf16>
    %c0_1 = arith.constant 0 : index
    %c0_2 = arith.constant 0 : index
    %1 = vector.load %arg6[%c0_1, %c0_2] : memref<32x128xbf16, #tpu.memory_space<vmem>>, vector<32x128xbf16>
    %c0_3 = arith.constant 0 : index
    %c0_4 = arith.constant 0 : index
    %2 = vector.load %arg0[%c0_3, %c0_4] : memref<16x4xf32, #tpu.memory_space<vmem>>, vector<16x4xf32>
    %3 = arith.truncf %2 : vector<16x4xf32> to vector<16x4xbf16>
    %c0_5 = arith.constant 0 : index
    %c0_6 = arith.constant 0 : index
    %4 = vector.load %arg2[%c0_5, %c0_6] : memref<4x128xbf16, #tpu.memory_space<vmem>>, vector<4x128xbf16>
    %cst = arith.constant dense<0.000000e+00> : vector<16x128xf32>
    %5 = tpu.matmul %3, %4, %cst {dimension_numbers = #tpu.dot_dimension_numbers<[1], [0], [0], [1], [0, 0, 1, 1], [], []>} : vector<16x4xbf16>, vector<4x128xbf16>, vector<16x128xf32> -> vector<16x128xf32>
    %c0_7 = arith.constant 0 : index
    %c0_8 = arith.constant 0 : index
    %6 = vector.load %arg4[%c0_7, %c0_8] : memref<1x128xf32, #tpu.memory_space<vmem>>, vector<1x128xf32>
    %7 = vector.broadcast %6 : vector<1x128xf32> to vector<16x128xf32>
    %8 = arith.addf %5, %7 : vector<16x128xf32>
    %c0_9 = arith.constant 0 : index
    %c0_10 = arith.constant 0 : index
    %9 = vector.load %arg1[%c0_9, %c0_10] : memref<12x4xf32, #tpu.memory_space<vmem>>, vector<12x4xf32>
    %10 = arith.truncf %9 : vector<12x4xf32> to vector<12x4xbf16>
    %c0_11 = arith.constant 0 : index
    %c0_12 = arith.constant 0 : index
    %11 = vector.load %arg5[%c0_11, %c0_12] : memref<4x128xbf16, #tpu.memory_space<vmem>>, vector<4x128xbf16>
    %cst_13 = arith.constant dense<0.000000e+00> : vector<12x128xf32>
    %12 = tpu.matmul %10, %11, %cst_13 {dimension_numbers = #tpu.dot_dimension_numbers<[1], [0], [0], [1], [0, 0, 1, 1], [], []>} : vector<12x4xbf16>, vector<4x128xbf16>, vector<12x128xf32> -> vector<12x128xf32>
    %c0_14 = arith.constant 0 : index
    %c0_15 = arith.constant 0 : index
    %13 = vector.load %arg7[%c0_14, %c0_15] : memref<1x128xf32, #tpu.memory_space<vmem>>, vector<1x128xf32>
    %14 = vector.broadcast %13 : vector<1x128xf32> to vector<12x128xf32>
    %15 = arith.addf %12, %14 : vector<12x128xf32>
    %c0_16 = arith.constant 0 : index
    %c0_17 = arith.constant 0 : index
    %16 = vector.load %arg8[%c0_16, %c0_17] : memref<2x32xf32, #tpu.memory_space<vmem>>, vector<2x32xf32>
    %c0_18 = arith.constant 0 : index
    %c0_19 = arith.constant 0 : index
    %17 = vector.load %arg9[%c0_18, %c0_19] : memref<2x32xf32, #tpu.memory_space<vmem>>, vector<2x32xf32>
    %18 = vector.extract_strided_slice %8 {offsets = [0, 0], sizes = [2, 128], strides = [1, 1]} : vector<16x128xf32> to vector<2x128xf32>
    %19 = arith.truncf %16 : vector<2x32xf32> to vector<2x32xbf16>
    %cst_20 = arith.constant dense<0.000000e+00> : vector<2x128xf32>
    %20 = tpu.matmul %19, %0, %cst_20 {dimension_numbers = #tpu.dot_dimension_numbers<[1], [0], [0], [1], [0, 0, 1, 1], [], []>} : vector<2x32xbf16>, vector<32x128xbf16>, vector<2x128xf32> -> vector<2x128xf32>
    %21 = arith.addf %18, %20 : vector<2x128xf32>
    %22 = arith.negf %21 : vector<2x128xf32>
    %23 = math.exp %22 : vector<2x128xf32>
    %cst_21 = arith.constant 1.000000e+00 : f32
    %24 = vector.broadcast %cst_21 : f32 to vector<2x128xf32>
    %25 = arith.addf %24, %23 : vector<2x128xf32>
    %26 = arith.divf %24, %25 : vector<2x128xf32>
    %27 = math.tanh %21 : vector<2x128xf32>
    %28 = vector.extract_strided_slice %26 {offsets = [0, 0], sizes = [2, 32], strides = [1, 1]} : vector<2x128xf32> to vector<2x32xf32>
    %29 = vector.extract_strided_slice %26 {offsets = [0, 32], sizes = [2, 32], strides = [1, 1]} : vector<2x128xf32> to vector<2x32xf32>
    %30 = vector.extract_strided_slice %27 {offsets = [0, 64], sizes = [2, 32], strides = [1, 1]} : vector<2x128xf32> to vector<2x32xf32>
    %31 = vector.extract_strided_slice %26 {offsets = [0, 96], sizes = [2, 32], strides = [1, 1]} : vector<2x128xf32> to vector<2x32xf32>
    %32 = arith.mulf %29, %17 : vector<2x32xf32>
    %33 = arith.mulf %28, %30 : vector<2x32xf32>
    %34 = arith.addf %32, %33 : vector<2x32xf32>
    %35 = math.tanh %34 : vector<2x32xf32>
    %36 = arith.mulf %31, %35 : vector<2x32xf32>
    %37 = vector.extract_strided_slice %8 {offsets = [2, 0], sizes = [2, 128], strides = [1, 1]} : vector<16x128xf32> to vector<2x128xf32>
    %38 = arith.truncf %36 : vector<2x32xf32> to vector<2x32xbf16>
    %cst_22 = arith.constant dense<0.000000e+00> : vector<2x128xf32>
    %39 = tpu.matmul %38, %0, %cst_22 {dimension_numbers = #tpu.dot_dimension_numbers<[1], [0], [0], [1], [0, 0, 1, 1], [], []>} : vector<2x32xbf16>, vector<32x128xbf16>, vector<2x128xf32> -> vector<2x128xf32>
    %40 = arith.addf %37, %39 : vector<2x128xf32>
    %41 = arith.negf %40 : vector<2x128xf32>
    %42 = math.exp %41 : vector<2x128xf32>
    %cst_23 = arith.constant 1.000000e+00 : f32
    %43 = vector.broadcast %cst_23 : f32 to vector<2x128xf32>
    %44 = arith.addf %43, %42 : vector<2x128xf32>
    %45 = arith.divf %43, %44 : vector<2x128xf32>
    %46 = math.tanh %40 : vector<2x128xf32>
    %47 = vector.extract_strided_slice %45 {offsets = [0, 0], sizes = [2, 32], strides = [1, 1]} : vector<2x128xf32> to vector<2x32xf32>
    %48 = vector.extract_strided_slice %45 {offsets = [0, 32], sizes = [2, 32], strides = [1, 1]} : vector<2x128xf32> to vector<2x32xf32>
    %49 = vector.extract_strided_slice %46 {offsets = [0, 64], sizes = [2, 32], strides = [1, 1]} : vector<2x128xf32> to vector<2x32xf32>
    %50 = vector.extract_strided_slice %45 {offsets = [0, 96], sizes = [2, 32], strides = [1, 1]} : vector<2x128xf32> to vector<2x32xf32>
    %51 = arith.mulf %48, %34 : vector<2x32xf32>
    %52 = arith.mulf %47, %49 : vector<2x32xf32>
    %53 = arith.addf %51, %52 : vector<2x32xf32>
    %54 = math.tanh %53 : vector<2x32xf32>
    %55 = arith.mulf %50, %54 : vector<2x32xf32>
    %56 = vector.extract_strided_slice %8 {offsets = [4, 0], sizes = [2, 128], strides = [1, 1]} : vector<16x128xf32> to vector<2x128xf32>
    %57 = arith.truncf %55 : vector<2x32xf32> to vector<2x32xbf16>
    %cst_24 = arith.constant dense<0.000000e+00> : vector<2x128xf32>
    %58 = tpu.matmul %57, %0, %cst_24 {dimension_numbers = #tpu.dot_dimension_numbers<[1], [0], [0], [1], [0, 0, 1, 1], [], []>} : vector<2x32xbf16>, vector<32x128xbf16>, vector<2x128xf32> -> vector<2x128xf32>
    %59 = arith.addf %56, %58 : vector<2x128xf32>
    %60 = arith.negf %59 : vector<2x128xf32>
    %61 = math.exp %60 : vector<2x128xf32>
    %cst_25 = arith.constant 1.000000e+00 : f32
    %62 = vector.broadcast %cst_25 : f32 to vector<2x128xf32>
    %63 = arith.addf %62, %61 : vector<2x128xf32>
    %64 = arith.divf %62, %63 : vector<2x128xf32>
    %65 = math.tanh %59 : vector<2x128xf32>
    %66 = vector.extract_strided_slice %64 {offsets = [0, 0], sizes = [2, 32], strides = [1, 1]} : vector<2x128xf32> to vector<2x32xf32>
    %67 = vector.extract_strided_slice %64 {offsets = [0, 32], sizes = [2, 32], strides = [1, 1]} : vector<2x128xf32> to vector<2x32xf32>
    %68 = vector.extract_strided_slice %65 {offsets = [0, 64], sizes = [2, 32], strides = [1, 1]} : vector<2x128xf32> to vector<2x32xf32>
    %69 = vector.extract_strided_slice %64 {offsets = [0, 96], sizes = [2, 32], strides = [1, 1]} : vector<2x128xf32> to vector<2x32xf32>
    %70 = arith.mulf %67, %53 : vector<2x32xf32>
    %71 = arith.mulf %66, %68 : vector<2x32xf32>
    %72 = arith.addf %70, %71 : vector<2x32xf32>
    %73 = math.tanh %72 : vector<2x32xf32>
    %74 = arith.mulf %69, %73 : vector<2x32xf32>
    %75 = vector.extract_strided_slice %8 {offsets = [6, 0], sizes = [2, 128], strides = [1, 1]} : vector<16x128xf32> to vector<2x128xf32>
    %76 = arith.truncf %74 : vector<2x32xf32> to vector<2x32xbf16>
    %cst_26 = arith.constant dense<0.000000e+00> : vector<2x128xf32>
    %77 = tpu.matmul %76, %0, %cst_26 {dimension_numbers = #tpu.dot_dimension_numbers<[1], [0], [0], [1], [0, 0, 1, 1], [], []>} : vector<2x32xbf16>, vector<32x128xbf16>, vector<2x128xf32> -> vector<2x128xf32>
    %78 = arith.addf %75, %77 : vector<2x128xf32>
    %79 = arith.negf %78 : vector<2x128xf32>
    %80 = math.exp %79 : vector<2x128xf32>
    %cst_27 = arith.constant 1.000000e+00 : f32
    %81 = vector.broadcast %cst_27 : f32 to vector<2x128xf32>
    %82 = arith.addf %81, %80 : vector<2x128xf32>
    %83 = arith.divf %81, %82 : vector<2x128xf32>
    %84 = math.tanh %78 : vector<2x128xf32>
    %85 = vector.extract_strided_slice %83 {offsets = [0, 0], sizes = [2, 32], strides = [1, 1]} : vector<2x128xf32> to vector<2x32xf32>
    %86 = vector.extract_strided_slice %83 {offsets = [0, 32], sizes = [2, 32], strides = [1, 1]} : vector<2x128xf32> to vector<2x32xf32>
    %87 = vector.extract_strided_slice %84 {offsets = [0, 64], sizes = [2, 32], strides = [1, 1]} : vector<2x128xf32> to vector<2x32xf32>
    %88 = vector.extract_strided_slice %83 {offsets = [0, 96], sizes = [2, 32], strides = [1, 1]} : vector<2x128xf32> to vector<2x32xf32>
    %89 = arith.mulf %86, %72 : vector<2x32xf32>
    %90 = arith.mulf %85, %87 : vector<2x32xf32>
    %91 = arith.addf %89, %90 : vector<2x32xf32>
    %92 = math.tanh %91 : vector<2x32xf32>
    %93 = arith.mulf %88, %92 : vector<2x32xf32>
    %94 = vector.extract_strided_slice %8 {offsets = [8, 0], sizes = [2, 128], strides = [1, 1]} : vector<16x128xf32> to vector<2x128xf32>
    %95 = arith.truncf %93 : vector<2x32xf32> to vector<2x32xbf16>
    %cst_28 = arith.constant dense<0.000000e+00> : vector<2x128xf32>
    %96 = tpu.matmul %95, %0, %cst_28 {dimension_numbers = #tpu.dot_dimension_numbers<[1], [0], [0], [1], [0, 0, 1, 1], [], []>} : vector<2x32xbf16>, vector<32x128xbf16>, vector<2x128xf32> -> vector<2x128xf32>
    %97 = arith.addf %94, %96 : vector<2x128xf32>
    %98 = arith.negf %97 : vector<2x128xf32>
    %99 = math.exp %98 : vector<2x128xf32>
    %cst_29 = arith.constant 1.000000e+00 : f32
    %100 = vector.broadcast %cst_29 : f32 to vector<2x128xf32>
    %101 = arith.addf %100, %99 : vector<2x128xf32>
    %102 = arith.divf %100, %101 : vector<2x128xf32>
    %103 = math.tanh %97 : vector<2x128xf32>
    %104 = vector.extract_strided_slice %102 {offsets = [0, 0], sizes = [2, 32], strides = [1, 1]} : vector<2x128xf32> to vector<2x32xf32>
    %105 = vector.extract_strided_slice %102 {offsets = [0, 32], sizes = [2, 32], strides = [1, 1]} : vector<2x128xf32> to vector<2x32xf32>
    %106 = vector.extract_strided_slice %103 {offsets = [0, 64], sizes = [2, 32], strides = [1, 1]} : vector<2x128xf32> to vector<2x32xf32>
    %107 = vector.extract_strided_slice %102 {offsets = [0, 96], sizes = [2, 32], strides = [1, 1]} : vector<2x128xf32> to vector<2x32xf32>
    %108 = arith.mulf %105, %91 : vector<2x32xf32>
    %109 = arith.mulf %104, %106 : vector<2x32xf32>
    %110 = arith.addf %108, %109 : vector<2x32xf32>
    %111 = math.tanh %110 : vector<2x32xf32>
    %112 = arith.mulf %107, %111 : vector<2x32xf32>
    %113 = vector.extract_strided_slice %8 {offsets = [10, 0], sizes = [2, 128], strides = [1, 1]} : vector<16x128xf32> to vector<2x128xf32>
    %114 = arith.truncf %112 : vector<2x32xf32> to vector<2x32xbf16>
    %cst_30 = arith.constant dense<0.000000e+00> : vector<2x128xf32>
    %115 = tpu.matmul %114, %0, %cst_30 {dimension_numbers = #tpu.dot_dimension_numbers<[1], [0], [0], [1], [0, 0, 1, 1], [], []>} : vector<2x32xbf16>, vector<32x128xbf16>, vector<2x128xf32> -> vector<2x128xf32>
    %116 = arith.addf %113, %115 : vector<2x128xf32>
    %117 = arith.negf %116 : vector<2x128xf32>
    %118 = math.exp %117 : vector<2x128xf32>
    %cst_31 = arith.constant 1.000000e+00 : f32
    %119 = vector.broadcast %cst_31 : f32 to vector<2x128xf32>
    %120 = arith.addf %119, %118 : vector<2x128xf32>
    %121 = arith.divf %119, %120 : vector<2x128xf32>
    %122 = math.tanh %116 : vector<2x128xf32>
    %123 = vector.extract_strided_slice %121 {offsets = [0, 0], sizes = [2, 32], strides = [1, 1]} : vector<2x128xf32> to vector<2x32xf32>
    %124 = vector.extract_strided_slice %121 {offsets = [0, 32], sizes = [2, 32], strides = [1, 1]} : vector<2x128xf32> to vector<2x32xf32>
    %125 = vector.extract_strided_slice %122 {offsets = [0, 64], sizes = [2, 32], strides = [1, 1]} : vector<2x128xf32> to vector<2x32xf32>
    %126 = vector.extract_strided_slice %121 {offsets = [0, 96], sizes = [2, 32], strides = [1, 1]} : vector<2x128xf32> to vector<2x32xf32>
    %127 = arith.mulf %124, %110 : vector<2x32xf32>
    %128 = arith.mulf %123, %125 : vector<2x32xf32>
    %129 = arith.addf %127, %128 : vector<2x32xf32>
    %130 = math.tanh %129 : vector<2x32xf32>
    %131 = arith.mulf %126, %130 : vector<2x32xf32>
    %132 = vector.extract_strided_slice %8 {offsets = [12, 0], sizes = [2, 128], strides = [1, 1]} : vector<16x128xf32> to vector<2x128xf32>
    %133 = arith.truncf %131 : vector<2x32xf32> to vector<2x32xbf16>
    %cst_32 = arith.constant dense<0.000000e+00> : vector<2x128xf32>
    %134 = tpu.matmul %133, %0, %cst_32 {dimension_numbers = #tpu.dot_dimension_numbers<[1], [0], [0], [1], [0, 0, 1, 1], [], []>} : vector<2x32xbf16>, vector<32x128xbf16>, vector<2x128xf32> -> vector<2x128xf32>
    %135 = arith.addf %132, %134 : vector<2x128xf32>
    %136 = arith.negf %135 : vector<2x128xf32>
    %137 = math.exp %136 : vector<2x128xf32>
    %cst_33 = arith.constant 1.000000e+00 : f32
    %138 = vector.broadcast %cst_33 : f32 to vector<2x128xf32>
    %139 = arith.addf %138, %137 : vector<2x128xf32>
    %140 = arith.divf %138, %139 : vector<2x128xf32>
    %141 = math.tanh %135 : vector<2x128xf32>
    %142 = vector.extract_strided_slice %140 {offsets = [0, 0], sizes = [2, 32], strides = [1, 1]} : vector<2x128xf32> to vector<2x32xf32>
    %143 = vector.extract_strided_slice %140 {offsets = [0, 32], sizes = [2, 32], strides = [1, 1]} : vector<2x128xf32> to vector<2x32xf32>
    %144 = vector.extract_strided_slice %141 {offsets = [0, 64], sizes = [2, 32], strides = [1, 1]} : vector<2x128xf32> to vector<2x32xf32>
    %145 = vector.extract_strided_slice %140 {offsets = [0, 96], sizes = [2, 32], strides = [1, 1]} : vector<2x128xf32> to vector<2x32xf32>
    %146 = arith.mulf %143, %129 : vector<2x32xf32>
    %147 = arith.mulf %142, %144 : vector<2x32xf32>
    %148 = arith.addf %146, %147 : vector<2x32xf32>
    %149 = math.tanh %148 : vector<2x32xf32>
    %150 = arith.mulf %145, %149 : vector<2x32xf32>
    %151 = vector.extract_strided_slice %8 {offsets = [14, 0], sizes = [2, 128], strides = [1, 1]} : vector<16x128xf32> to vector<2x128xf32>
    %152 = arith.truncf %150 : vector<2x32xf32> to vector<2x32xbf16>
    %cst_34 = arith.constant dense<0.000000e+00> : vector<2x128xf32>
    %153 = tpu.matmul %152, %0, %cst_34 {dimension_numbers = #tpu.dot_dimension_numbers<[1], [0], [0], [1], [0, 0, 1, 1], [], []>} : vector<2x32xbf16>, vector<32x128xbf16>, vector<2x128xf32> -> vector<2x128xf32>
    %154 = arith.addf %151, %153 : vector<2x128xf32>
    %155 = arith.negf %154 : vector<2x128xf32>
    %156 = math.exp %155 : vector<2x128xf32>
    %cst_35 = arith.constant 1.000000e+00 : f32
    %157 = vector.broadcast %cst_35 : f32 to vector<2x128xf32>
    %158 = arith.addf %157, %156 : vector<2x128xf32>
    %159 = arith.divf %157, %158 : vector<2x128xf32>
    %160 = math.tanh %154 : vector<2x128xf32>
    %161 = vector.extract_strided_slice %159 {offsets = [0, 0], sizes = [2, 32], strides = [1, 1]} : vector<2x128xf32> to vector<2x32xf32>
    %162 = vector.extract_strided_slice %159 {offsets = [0, 32], sizes = [2, 32], strides = [1, 1]} : vector<2x128xf32> to vector<2x32xf32>
    %163 = vector.extract_strided_slice %160 {offsets = [0, 64], sizes = [2, 32], strides = [1, 1]} : vector<2x128xf32> to vector<2x32xf32>
    %164 = vector.extract_strided_slice %159 {offsets = [0, 96], sizes = [2, 32], strides = [1, 1]} : vector<2x128xf32> to vector<2x32xf32>
    %165 = arith.mulf %162, %148 : vector<2x32xf32>
    %166 = arith.mulf %161, %163 : vector<2x32xf32>
    %167 = arith.addf %165, %166 : vector<2x32xf32>
    %168 = math.tanh %167 : vector<2x32xf32>
    %169 = arith.mulf %164, %168 : vector<2x32xf32>
    %170 = vector.extract_strided_slice %15 {offsets = [0, 0], sizes = [2, 128], strides = [1, 1]} : vector<12x128xf32> to vector<2x128xf32>
    %171 = arith.truncf %169 : vector<2x32xf32> to vector<2x32xbf16>
    %cst_36 = arith.constant dense<0.000000e+00> : vector<2x128xf32>
    %172 = tpu.matmul %171, %1, %cst_36 {dimension_numbers = #tpu.dot_dimension_numbers<[1], [0], [0], [1], [0, 0, 1, 1], [], []>} : vector<2x32xbf16>, vector<32x128xbf16>, vector<2x128xf32> -> vector<2x128xf32>
    %173 = arith.addf %170, %172 : vector<2x128xf32>
    %174 = arith.negf %173 : vector<2x128xf32>
    %175 = math.exp %174 : vector<2x128xf32>
    %cst_37 = arith.constant 1.000000e+00 : f32
    %176 = vector.broadcast %cst_37 : f32 to vector<2x128xf32>
    %177 = arith.addf %176, %175 : vector<2x128xf32>
    %178 = arith.divf %176, %177 : vector<2x128xf32>
    %179 = math.tanh %173 : vector<2x128xf32>
    %180 = vector.extract_strided_slice %178 {offsets = [0, 0], sizes = [2, 32], strides = [1, 1]} : vector<2x128xf32> to vector<2x32xf32>
    %181 = vector.extract_strided_slice %178 {offsets = [0, 32], sizes = [2, 32], strides = [1, 1]} : vector<2x128xf32> to vector<2x32xf32>
    %182 = vector.extract_strided_slice %179 {offsets = [0, 64], sizes = [2, 32], strides = [1, 1]} : vector<2x128xf32> to vector<2x32xf32>
    %183 = vector.extract_strided_slice %178 {offsets = [0, 96], sizes = [2, 32], strides = [1, 1]} : vector<2x128xf32> to vector<2x32xf32>
    %184 = arith.mulf %181, %167 : vector<2x32xf32>
    %185 = arith.mulf %180, %182 : vector<2x32xf32>
    %186 = arith.addf %184, %185 : vector<2x32xf32>
    %187 = math.tanh %186 : vector<2x32xf32>
    %188 = arith.mulf %183, %187 : vector<2x32xf32>
    %189 = vector.extract_strided_slice %15 {offsets = [2, 0], sizes = [2, 128], strides = [1, 1]} : vector<12x128xf32> to vector<2x128xf32>
    %190 = arith.truncf %188 : vector<2x32xf32> to vector<2x32xbf16>
    %cst_38 = arith.constant dense<0.000000e+00> : vector<2x128xf32>
    %191 = tpu.matmul %190, %1, %cst_38 {dimension_numbers = #tpu.dot_dimension_numbers<[1], [0], [0], [1], [0, 0, 1, 1], [], []>} : vector<2x32xbf16>, vector<32x128xbf16>, vector<2x128xf32> -> vector<2x128xf32>
    %192 = arith.addf %189, %191 : vector<2x128xf32>
    %193 = arith.negf %192 : vector<2x128xf32>
    %194 = math.exp %193 : vector<2x128xf32>
    %cst_39 = arith.constant 1.000000e+00 : f32
    %195 = vector.broadcast %cst_39 : f32 to vector<2x128xf32>
    %196 = arith.addf %195, %194 : vector<2x128xf32>
    %197 = arith.divf %195, %196 : vector<2x128xf32>
    %198 = math.tanh %192 : vector<2x128xf32>
    %199 = vector.extract_strided_slice %197 {offsets = [0, 0], sizes = [2, 32], strides = [1, 1]} : vector<2x128xf32> to vector<2x32xf32>
    %200 = vector.extract_strided_slice %197 {offsets = [0, 32], sizes = [2, 32], strides = [1, 1]} : vector<2x128xf32> to vector<2x32xf32>
    %201 = vector.extract_strided_slice %198 {offsets = [0, 64], sizes = [2, 32], strides = [1, 1]} : vector<2x128xf32> to vector<2x32xf32>
    %202 = vector.extract_strided_slice %197 {offsets = [0, 96], sizes = [2, 32], strides = [1, 1]} : vector<2x128xf32> to vector<2x32xf32>
    %203 = arith.mulf %200, %186 : vector<2x32xf32>
    %204 = arith.mulf %199, %201 : vector<2x32xf32>
    %205 = arith.addf %203, %204 : vector<2x32xf32>
    %206 = math.tanh %205 : vector<2x32xf32>
    %207 = arith.mulf %202, %206 : vector<2x32xf32>
    %208 = vector.extract_strided_slice %15 {offsets = [4, 0], sizes = [2, 128], strides = [1, 1]} : vector<12x128xf32> to vector<2x128xf32>
    %209 = arith.truncf %207 : vector<2x32xf32> to vector<2x32xbf16>
    %cst_40 = arith.constant dense<0.000000e+00> : vector<2x128xf32>
    %210 = tpu.matmul %209, %1, %cst_40 {dimension_numbers = #tpu.dot_dimension_numbers<[1], [0], [0], [1], [0, 0, 1, 1], [], []>} : vector<2x32xbf16>, vector<32x128xbf16>, vector<2x128xf32> -> vector<2x128xf32>
    %211 = arith.addf %208, %210 : vector<2x128xf32>
    %212 = arith.negf %211 : vector<2x128xf32>
    %213 = math.exp %212 : vector<2x128xf32>
    %cst_41 = arith.constant 1.000000e+00 : f32
    %214 = vector.broadcast %cst_41 : f32 to vector<2x128xf32>
    %215 = arith.addf %214, %213 : vector<2x128xf32>
    %216 = arith.divf %214, %215 : vector<2x128xf32>
    %217 = math.tanh %211 : vector<2x128xf32>
    %218 = vector.extract_strided_slice %216 {offsets = [0, 0], sizes = [2, 32], strides = [1, 1]} : vector<2x128xf32> to vector<2x32xf32>
    %219 = vector.extract_strided_slice %216 {offsets = [0, 32], sizes = [2, 32], strides = [1, 1]} : vector<2x128xf32> to vector<2x32xf32>
    %220 = vector.extract_strided_slice %217 {offsets = [0, 64], sizes = [2, 32], strides = [1, 1]} : vector<2x128xf32> to vector<2x32xf32>
    %221 = vector.extract_strided_slice %216 {offsets = [0, 96], sizes = [2, 32], strides = [1, 1]} : vector<2x128xf32> to vector<2x32xf32>
    %222 = arith.mulf %219, %205 : vector<2x32xf32>
    %223 = arith.mulf %218, %220 : vector<2x32xf32>
    %224 = arith.addf %222, %223 : vector<2x32xf32>
    %225 = math.tanh %224 : vector<2x32xf32>
    %226 = arith.mulf %221, %225 : vector<2x32xf32>
    %227 = vector.extract_strided_slice %15 {offsets = [6, 0], sizes = [2, 128], strides = [1, 1]} : vector<12x128xf32> to vector<2x128xf32>
    %228 = arith.truncf %226 : vector<2x32xf32> to vector<2x32xbf16>
    %cst_42 = arith.constant dense<0.000000e+00> : vector<2x128xf32>
    %229 = tpu.matmul %228, %1, %cst_42 {dimension_numbers = #tpu.dot_dimension_numbers<[1], [0], [0], [1], [0, 0, 1, 1], [], []>} : vector<2x32xbf16>, vector<32x128xbf16>, vector<2x128xf32> -> vector<2x128xf32>
    %230 = arith.addf %227, %229 : vector<2x128xf32>
    %231 = arith.negf %230 : vector<2x128xf32>
    %232 = math.exp %231 : vector<2x128xf32>
    %cst_43 = arith.constant 1.000000e+00 : f32
    %233 = vector.broadcast %cst_43 : f32 to vector<2x128xf32>
    %234 = arith.addf %233, %232 : vector<2x128xf32>
    %235 = arith.divf %233, %234 : vector<2x128xf32>
    %236 = math.tanh %230 : vector<2x128xf32>
    %237 = vector.extract_strided_slice %235 {offsets = [0, 0], sizes = [2, 32], strides = [1, 1]} : vector<2x128xf32> to vector<2x32xf32>
    %238 = vector.extract_strided_slice %235 {offsets = [0, 32], sizes = [2, 32], strides = [1, 1]} : vector<2x128xf32> to vector<2x32xf32>
    %239 = vector.extract_strided_slice %236 {offsets = [0, 64], sizes = [2, 32], strides = [1, 1]} : vector<2x128xf32> to vector<2x32xf32>
    %240 = vector.extract_strided_slice %235 {offsets = [0, 96], sizes = [2, 32], strides = [1, 1]} : vector<2x128xf32> to vector<2x32xf32>
    %241 = arith.mulf %238, %224 : vector<2x32xf32>
    %242 = arith.mulf %237, %239 : vector<2x32xf32>
    %243 = arith.addf %241, %242 : vector<2x32xf32>
    %244 = math.tanh %243 : vector<2x32xf32>
    %245 = arith.mulf %240, %244 : vector<2x32xf32>
    %246 = vector.extract_strided_slice %15 {offsets = [8, 0], sizes = [2, 128], strides = [1, 1]} : vector<12x128xf32> to vector<2x128xf32>
    %247 = arith.truncf %245 : vector<2x32xf32> to vector<2x32xbf16>
    %cst_44 = arith.constant dense<0.000000e+00> : vector<2x128xf32>
    %248 = tpu.matmul %247, %1, %cst_44 {dimension_numbers = #tpu.dot_dimension_numbers<[1], [0], [0], [1], [0, 0, 1, 1], [], []>} : vector<2x32xbf16>, vector<32x128xbf16>, vector<2x128xf32> -> vector<2x128xf32>
    %249 = arith.addf %246, %248 : vector<2x128xf32>
    %250 = arith.negf %249 : vector<2x128xf32>
    %251 = math.exp %250 : vector<2x128xf32>
    %cst_45 = arith.constant 1.000000e+00 : f32
    %252 = vector.broadcast %cst_45 : f32 to vector<2x128xf32>
    %253 = arith.addf %252, %251 : vector<2x128xf32>
    %254 = arith.divf %252, %253 : vector<2x128xf32>
    %255 = math.tanh %249 : vector<2x128xf32>
    %256 = vector.extract_strided_slice %254 {offsets = [0, 0], sizes = [2, 32], strides = [1, 1]} : vector<2x128xf32> to vector<2x32xf32>
    %257 = vector.extract_strided_slice %254 {offsets = [0, 32], sizes = [2, 32], strides = [1, 1]} : vector<2x128xf32> to vector<2x32xf32>
    %258 = vector.extract_strided_slice %255 {offsets = [0, 64], sizes = [2, 32], strides = [1, 1]} : vector<2x128xf32> to vector<2x32xf32>
    %259 = vector.extract_strided_slice %254 {offsets = [0, 96], sizes = [2, 32], strides = [1, 1]} : vector<2x128xf32> to vector<2x32xf32>
    %260 = arith.mulf %257, %243 : vector<2x32xf32>
    %261 = arith.mulf %256, %258 : vector<2x32xf32>
    %262 = arith.addf %260, %261 : vector<2x32xf32>
    %263 = math.tanh %262 : vector<2x32xf32>
    %264 = arith.mulf %259, %263 : vector<2x32xf32>
    %265 = vector.extract_strided_slice %15 {offsets = [10, 0], sizes = [2, 128], strides = [1, 1]} : vector<12x128xf32> to vector<2x128xf32>
    %266 = arith.truncf %264 : vector<2x32xf32> to vector<2x32xbf16>
    %cst_46 = arith.constant dense<0.000000e+00> : vector<2x128xf32>
    %267 = tpu.matmul %266, %1, %cst_46 {dimension_numbers = #tpu.dot_dimension_numbers<[1], [0], [0], [1], [0, 0, 1, 1], [], []>} : vector<2x32xbf16>, vector<32x128xbf16>, vector<2x128xf32> -> vector<2x128xf32>
    %268 = arith.addf %265, %267 : vector<2x128xf32>
    %269 = arith.negf %268 : vector<2x128xf32>
    %270 = math.exp %269 : vector<2x128xf32>
    %cst_47 = arith.constant 1.000000e+00 : f32
    %271 = vector.broadcast %cst_47 : f32 to vector<2x128xf32>
    %272 = arith.addf %271, %270 : vector<2x128xf32>
    %273 = arith.divf %271, %272 : vector<2x128xf32>
    %274 = math.tanh %268 : vector<2x128xf32>
    %275 = vector.extract_strided_slice %273 {offsets = [0, 0], sizes = [2, 32], strides = [1, 1]} : vector<2x128xf32> to vector<2x32xf32>
    %276 = vector.extract_strided_slice %273 {offsets = [0, 32], sizes = [2, 32], strides = [1, 1]} : vector<2x128xf32> to vector<2x32xf32>
    %277 = vector.extract_strided_slice %274 {offsets = [0, 64], sizes = [2, 32], strides = [1, 1]} : vector<2x128xf32> to vector<2x32xf32>
    %278 = vector.extract_strided_slice %273 {offsets = [0, 96], sizes = [2, 32], strides = [1, 1]} : vector<2x128xf32> to vector<2x32xf32>
    %279 = arith.mulf %276, %262 : vector<2x32xf32>
    %280 = arith.mulf %275, %277 : vector<2x32xf32>
    %281 = arith.addf %279, %280 : vector<2x32xf32>
    %282 = math.tanh %281 : vector<2x32xf32>
    %283 = arith.mulf %278, %282 : vector<2x32xf32>
    %284 = tpu.concatenate %188, %207, %226, %245, %264, %283 in 0 : vector<2x32xf32>, vector<2x32xf32>, vector<2x32xf32>, vector<2x32xf32>, vector<2x32xf32>, vector<2x32xf32> -> vector<12x32xf32>
    %285 = arith.truncf %284 : vector<12x32xf32> to vector<12x32xbf16>
    %c0_48 = arith.constant 0 : index
    %c0_49 = arith.constant 0 : index
    %286 = vector.load %arg10[%c0_48, %c0_49] : memref<32x128xbf16, #tpu.memory_space<vmem>>, vector<32x128xbf16>
    %cst_50 = arith.constant dense<0.000000e+00> : vector<12x128xf32>
    %287 = tpu.matmul %285, %286, %cst_50 {dimension_numbers = #tpu.dot_dimension_numbers<[1], [0], [0], [1], [0, 0, 1, 1], [], []>} : vector<12x32xbf16>, vector<32x128xbf16>, vector<12x128xf32> -> vector<12x128xf32>
    %c0_51 = arith.constant 0 : index
    %c0_52 = arith.constant 0 : index
    %288 = vector.load %arg11[%c0_51, %c0_52] : memref<1x128xf32, #tpu.memory_space<vmem>>, vector<1x128xf32>
    %289 = vector.broadcast %288 : vector<1x128xf32> to vector<12x128xf32>
    %290 = arith.addf %287, %289 : vector<12x128xf32>
    %291 = tpu.iota {dimensions = array<i32: 1>} : vector<12x128xi32>
    %c2_i32 = arith.constant 2 : i32
    %292 = vector.broadcast %c2_i32 : i32 to vector<12x128xi32>
    %293 = arith.cmpi slt, %291, %292 : vector<12x128xi32>
    %294 = math.tanh %290 : vector<12x128xf32>
    %295 = arith.negf %290 : vector<12x128xf32>
    %296 = math.exp %295 : vector<12x128xf32>
    %cst_53 = arith.constant 1.000000e+00 : f32
    %297 = vector.broadcast %cst_53 : f32 to vector<12x128xf32>
    %298 = arith.addf %297, %296 : vector<12x128xf32>
    %299 = arith.divf %297, %298 : vector<12x128xf32>
    %300 = arith.select %293, %294, %299 : vector<12x128xi1>, vector<12x128xf32>
    %c0_54 = arith.constant 0 : index
    %c0_55 = arith.constant 0 : index
    %301 = vector.load %arg12[%c0_54, %c0_55] : memref<12x128xf32, #tpu.memory_space<vmem>>, vector<12x128xf32>
    tpu.vector_store %arg12[%c0_54, %c0_55], %300 {strides = array<i32>} : memref<12x128xf32, #tpu.memory_space<vmem>>, vector<12x128xf32>,
    return
  }
}

</mosaic_0001>

<llo_original>
// kernel: seq2seq_forward.1
$region0: #{seq2seq_forward.1}
  #allocation0 [shape = 'u32[]', space=smem, size = 0x4, offset = 0x4, fixed_abs, tag = 'smem constant byte address 0x4 - core index']
  #allocation1 [shape = 'u32[144,128]{1,0:T(1,128)}', space=vmem, size = 0x12000, scoped, tag = 'internal scratch']
  %s0 = inlined_call_operand.vmem [shape: f32[16,4], index: 0, kind: input, shape index: {}]
  %s1 = inlined_call_operand.vmem [shape: f32[12,4], index: 1, kind: input, shape index: {}]
  %s2 = inlined_call_operand.vmem [shape: bf16[4,128], index: 2, kind: input, shape index: {}]
  %s3 = inlined_call_operand.vmem [shape: bf16[32,128], index: 3, kind: input, shape index: {}]
  %s4 = inlined_call_operand.vmem [shape: f32[1,128], index: 4, kind: input, shape index: {}]
  %s5 = inlined_call_operand.vmem [shape: bf16[4,128], index: 5, kind: input, shape index: {}]
  %s6 = inlined_call_operand.vmem [shape: bf16[32,128], index: 6, kind: input, shape index: {}]
  %s7 = inlined_call_operand.vmem [shape: f32[1,128], index: 7, kind: input, shape index: {}]
  %s8 = inlined_call_operand.vmem [shape: f32[2,32], index: 8, kind: input, shape index: {}]
  %s9 = inlined_call_operand.vmem [shape: f32[2,32], index: 9, kind: input, shape index: {}]
  %s10 = inlined_call_operand.vmem [shape: bf16[32,128], index: 10, kind: input, shape index: {}]
  %s11 = inlined_call_operand.vmem [shape: f32[1,128], index: 11, kind: input, shape index: {}]
  %s12 = inlined_call_operand.vmem [shape: f32[12,128], index: 12, kind: output, shape index: {}]
  %s13 = sld [smem:[#allocation0]]
  $region58: #{seq2seq_forward.1} parent=0
    _
  %s15 = ssub.s32 1, %s13
  %s16 = scalar_select 0, %s15, %s13
  // Predicated region
  $region2: #{seq2seq_forward.1} parent=0 // pred_check
    _
  $region3: #{seq2seq_forward.1} parent=0 // pred_check_branch
    %18 = sbr.rel (0) target = $region5
  $region4: #{seq2seq_forward.1} parent=0 // pred_region
    _
  $region5: #{seq2seq_forward.1} parent=0 // pred_fallthru
    _
  // Predicated region
  $region6: #{seq2seq_forward.1} parent=0 // pred_check
    _
  $region7: #{seq2seq_forward.1} parent=0 // pred_check_branch
    %20 = sbr.rel (0) target = $region9
  $region8: #{seq2seq_forward.1} parent=0 // pred_region
    _
  $region9: #{seq2seq_forward.1} parent=0 // pred_fallthru
    _
  // Predicated region
  $region10: #{seq2seq_forward.1} parent=0 // pred_check
    _
  $region11: #{seq2seq_forward.1} parent=0 // pred_check_branch
    %22 = sbr.rel (0) target = $region13
  $region12: #{seq2seq_forward.1} parent=0 // pred_region
    _
  $region13: #{seq2seq_forward.1} parent=0 // pred_fallthru
    _
  // Predicated region
  $region14: #{seq2seq_forward.1} parent=0 // pred_check
    _
  $region15: #{seq2seq_forward.1} parent=0 // pred_check_branch
    %24 = sbr.rel (0) target = $region17
  $region16: #{seq2seq_forward.1} parent=0 // pred_region
    _
  $region17: #{seq2seq_forward.1} parent=0 // pred_fallthru
    _
  // Predicated region
  $region18: #{seq2seq_forward.1} parent=0 // pred_check
    _
  $region19: #{seq2seq_forward.1} parent=0 // pred_check_branch
    %26 = sbr.rel (0) target = $region21
  $region20: #{seq2seq_forward.1} parent=0 // pred_region
    _
  $region21: #{seq2seq_forward.1} parent=0 // pred_fallthru
    _
  // Predicated region
  $region22: #{seq2seq_forward.1} parent=0 // pred_check
    _
  $region23: #{seq2seq_forward.1} parent=0 // pred_check_branch
    %28 = sbr.rel (0) target = $region25
  $region24: #{seq2seq_forward.1} parent=0 // pred_region
    _
  $region25: #{seq2seq_forward.1} parent=0 // pred_fallthru
    _
  // Predicated region
  $region26: #{seq2seq_forward.1} parent=0 // pred_check
    _
  $region27: #{seq2seq_forward.1} parent=0 // pred_check_branch
    %30 = sbr.rel (0) target = $region29
  $region28: #{seq2seq_forward.1} parent=0 // pred_region
    _
  $region29: #{seq2seq_forward.1} parent=0 // pred_fallthru
    _
  // Predicated region
  $region30: #{seq2seq_forward.1} parent=0 // pred_check
    _
  $region31: #{seq2seq_forward.1} parent=0 // pred_check_branch
    %32 = sbr.rel (0) target = $region33
  $region32: #{seq2seq_forward.1} parent=0 // pred_region
    _
  $region33: #{seq2seq_forward.1} parent=0 // pred_fallthru
    _
  // Predicated region
  $region34: #{seq2seq_forward.1} parent=0 // pred_check
    _
  $region35: #{seq2seq_forward.1} parent=0 // pred_check_branch
    %34 = sbr.rel (0) target = $region37
  $region36: #{seq2seq_forward.1} parent=0 // pred_region
    _
  $region37: #{seq2seq_forward.1} parent=0 // pred_fallthru
    _
  // Predicated region
  $region38: #{seq2seq_forward.1} parent=0 // pred_check
    _
  $region39: #{seq2seq_forward.1} parent=0 // pred_check_branch
    %36 = sbr.rel (0) target = $region41
  $region40: #{seq2seq_forward.1} parent=0 // pred_region
    _
  $region41: #{seq2seq_forward.1} parent=0 // pred_fallthru
    _
  // Predicated region
  $region42: #{seq2seq_forward.1} parent=0 // pred_check
    _
  $region43: #{seq2seq_forward.1} parent=0 // pred_check_branch
    %38 = sbr.rel (0) target = $region45
  $region44: #{seq2seq_forward.1} parent=0 // pred_region
    _
  $region45: #{seq2seq_forward.1} parent=0 // pred_fallthru
    _
  // Predicated region
  $region46: #{seq2seq_forward.1} parent=0 // pred_check
    _
  $region47: #{seq2seq_forward.1} parent=0 // pred_check_branch
    %40 = sbr.rel (0) target = $region49
  $region48: #{seq2seq_forward.1} parent=0 // pred_region
    _
  $region49: #{seq2seq_forward.1} parent=0 // pred_fallthru
    _
  %v42 = vld [vmem:[%s3] sm:$0xf]
  %v43 = vld [vmem:[%s3 + $0x4] sm:$0xf]
  %v44 = vld [vmem:[%s3 + $0x8] sm:$0xf]
  %v45 = vld [vmem:[%s3 + $0xc] sm:$0xf]
  %v46 = vld [vmem:[%s6] sm:$0xf]
  %v47 = vld [vmem:[%s6 + $0x4] sm:$0xf]
  %v48 = vld [vmem:[%s6 + $0x8] sm:$0xf]
  %v49 = vld [vmem:[%s6 + $0xc] sm:$0xf]
  %v50 = vld [vmem:[%s0] sm:$0xff]
  %v51 = vld [vmem:[%s0 + $0x8] sm:$0xff]
  %v52 = vpack.c.bf16 %v51, %v50
  %v53 = vld [vmem:[%s2] sm:$0x3]
  %v54 = vld [vmem:[%s4] sm:$0x1]
  %v56 = vlaneseq
  %v57 = vshrl.u32 %v56, 7
  %v58 = vsub.s32 0, %v57
  %v59 = vrot.slane %v54, %v58
  %vm61 = vcmask 31744
  %v63 = vsel %vm61, %v52, 0
  %vm65 = vcmask 1041408
  %v67 = vsel %vm65, %v53, 0
  %69 = vmatprep.subr.bf16.mxu0 0
  %70 = vmatpush1.bf16.msra.mxu0 %v67
  %71 = vmatprep.subr.bf16.mxu0 0
  %72 = vmatpush1.bf16.msra.mxu0 0
  %73 = vmatprep.subr.bf16.mxu0 0
  %74 = vmatpush1.bf16.msra.mxu0 0
  %75 = vmatprep.subr.bf16.mxu0 0
  %76 = vmatpush1.bf16.msra.mxu0 0
  %77 = vmatprep.subr.bf16.mxu0 0
  %78 = vmatpush1.bf16.msra.mxu0 0
  %79 = vmatprep.subr.bf16.mxu0 0
  %80 = vmatpush1.bf16.msra.mxu0 0
  %81 = vmatprep.subr.bf16.mxu0 0
  %82 = vmatpush1.bf16.msra.mxu0 0
  %83 = vmatprep.subr.bf16.mxu0 0
  %84 = vmatpush1.bf16.msra.mxu0 0
  %85 = vmatprep.subr.bf16.mxu0 0
  %86 = vmatpush1.bf16.msra.mxu0 0
  %87 = vmatprep.subr.bf16.mxu0 0
  %88 = vmatpush1.bf16.msra.mxu0 0
  %89 = vmatprep.subr.bf16.mxu0 0
  %90 = vmatpush1.bf16.msra.mxu0 0
  %91 = vmatprep.subr.bf16.mxu0 0
  %92 = vmatpush1.bf16.msra.mxu0 0
  %93 = vmatprep.subr.bf16.mxu0 0
  %94 = vmatpush1.bf16.msra.mxu0 0
  %95 = vmatprep.subr.bf16.mxu0 0
  %96 = vmatpush1.bf16.msra.mxu0 0
  %97 = vmatprep.subr.bf16.mxu0 0
  %98 = vmatpush1.bf16.msra.mxu0 0
  %99 = vmatprep.subr.bf16.mxu0 0
  %100 = vmatpush1.bf16.msra.mxu0 0
  %101 = vmatprep.mubr.bf16.mxu0 0
  %102 = vmatmul.mubr.bf16.gmra.mrb[0].mxu0 %v63
  %v103 = vpop.f32.mrb[0].mxu0
  %v104 = vadd.f32 %v59, %v103
  %v105 = vpop.f32.mrb[0].mxu0
  %v106 = vpop.f32.mrb[0].mxu0
  %v107 = vadd.f32 %v59, %v106
  %v108 = vpop.f32.mrb[0].mxu0
  %109 = vdwg.mxu0
  %v110 = vld [vmem:[%s1] sm:$0xff]
  %v111 = vld [vmem:[%s1 + $0x8] sm:$0xf]
  %v112 = vpack.c.bf16 %v111, %v110
  %v113 = vld [vmem:[%s5] sm:$0x3]
  %v114 = vld [vmem:[%s7] sm:$0x1]
  %v116 = vlaneseq
  %v117 = vshrl.u32 %v116, 7
  %v118 = vsub.s32 0, %v117
  %v119 = vrot.slane %v114, %v118
  %v122 = vsel %vm61, %v112, 0
  %v125 = vsel %vm65, %v113, 0
  %127 = vmatprep.subr.bf16.mxu0 0
  %128 = vmatpush1.bf16.msra.mxu0 %v125
  %129 = vmatprep.subr.bf16.mxu0 0
  %130 = vmatpush1.bf16.msra.mxu0 0
  %131 = vmatprep.subr.bf16.mxu0 0
  %132 = vmatpush1.bf16.msra.mxu0 0
  %133 = vmatprep.subr.bf16.mxu0 0
  %134 = vmatpush1.bf16.msra.mxu0 0
  %135 = vmatprep.subr.bf16.mxu0 0
  %136 = vmatpush1.bf16.msra.mxu0 0
  %137 = vmatprep.subr.bf16.mxu0 0
  %138 = vmatpush1.bf16.msra.mxu0 0
  %139 = vmatprep.subr.bf16.mxu0 0
  %140 = vmatpush1.bf16.msra.mxu0 0
  %141 = vmatprep.subr.bf16.mxu0 0
  %142 = vmatpush1.bf16.msra.mxu0 0
  %143 = vmatprep.subr.bf16.mxu0 0
  %144 = vmatpush1.bf16.msra.mxu0 0
  %145 = vmatprep.subr.bf16.mxu0 0
  %146 = vmatpush1.bf16.msra.mxu0 0
  %147 = vmatprep.subr.bf16.mxu0 0
  %148 = vmatpush1.bf16.msra.mxu0 0
  %149 = vmatprep.subr.bf16.mxu0 0
  %150 = vmatpush1.bf16.msra.mxu0 0
  %151 = vmatprep.subr.bf16.mxu0 0
  %152 = vmatpush1.bf16.msra.mxu0 0
  %153 = vmatprep.subr.bf16.mxu0 0
  %154 = vmatpush1.bf16.msra.mxu0 0
  %155 = vmatprep.subr.bf16.mxu0 0
  %156 = vmatpush1.bf16.msra.mxu0 0
  %157 = vmatprep.subr.bf16.mxu0 0
  %158 = vmatpush1.bf16.msra.mxu0 0
  %159 = vmatprep.mubr.bf16.mxu0 0
  %160 = vmatmul.mubr.bf16.gmra.mrb[0].mxu0 %v122
  %v161 = vpop.f32.mrb[0].mxu0
  %v162 = vadd.f32 %v119, %v161
  %v163 = vpop.f32.mrb[0].mxu0
  %v164 = vpop.f32.mrb[0].mxu0
  %v165 = vadd.f32 %v119, %v164
  %v166 = vpop.f32.mrb[0].mxu0
  %167 = vdwg.mxu0
  %v168 = vld [vmem:[%s8] sm:$0x3]
  %v169 = vld [vmem:[%s9] sm:$0x3]
  %v170 = vpack.c.bf16 %v168, %v168
  %v175 = vunpack.c.l.b16 %v42
  %v176 = vunpack.c.l.b16 %v43
  %v177 = vunpack.c.l.b16 %v44
  %v178 = vunpack.c.l.b16 %v45
  %v179 = vpack.c.b16 %v176, %v175
  %v180 = vpack.c.b16 %v178, %v177
  %vm183 = vcmask 261120
  %v185 = vsel %vm183, %v170, 0
  %187 = vmatprep.subr.bf16.mxu0 0
  %188 = vmatpush1.bf16.msra.mxu0 %v179
  %189 = vmatprep.subr.bf16.mxu0 0
  %190 = vmatpush1.bf16.msra.mxu0 %v180
  %191 = vmatprep.subr.bf16.mxu0 0
  %192 = vmatpush1.bf16.msra.mxu0 0
  %193 = vmatprep.subr.bf16.mxu0 0
  %194 = vmatpush1.bf16.msra.mxu0 0
  %195 = vmatprep.subr.bf16.mxu0 0
  %196 = vmatpush1.bf16.msra.mxu0 0
  %197 = vmatprep.subr.bf16.mxu0 0
  %198 = vmatpush1.bf16.msra.mxu0 0
  %199 = vmatprep.subr.bf16.mxu0 0
  %200 = vmatpush1.bf16.msra.mxu0 0
  %201 = vmatprep.subr.bf16.mxu0 0
  %202 = vmatpush1.bf16.msra.mxu0 0
  %203 = vmatprep.subr.bf16.mxu0 0
  %204 = vmatpush1.bf16.msra.mxu0 0
  %205 = vmatprep.subr.bf16.mxu0 0
  %206 = vmatpush1.bf16.msra.mxu0 0
  %207 = vmatprep.subr.bf16.mxu0 0
  %208 = vmatpush1.bf16.msra.mxu0 0
  %209 = vmatprep.subr.bf16.mxu0 0
  %210 = vmatpush1.bf16.msra.mxu0 0
  %211 = vmatprep.subr.bf16.mxu0 0
  %212 = vmatpush1.bf16.msra.mxu0 0
  %213 = vmatprep.subr.bf16.mxu0 0
  %214 = vmatpush1.bf16.msra.mxu0 0
  %215 = vmatprep.subr.bf16.mxu0 0
  %216 = vmatpush1.bf16.msra.mxu0 0
  %217 = vmatprep.subr.bf16.mxu0 0
  %218 = vmatpush1.bf16.msra.mxu0 0
  %219 = vmatprep.mubr.bf16.mxu0 0
  %220 = vmatmul.mubr.bf16.gmra.mrb[0].mxu0 %v185
  %v221 = vpop.f32.mrb[0].mxu0
  %v222 = vadd.f32 0.0, %v221
  %v223 = vpop.f32.mrb[0].mxu0
  %v224 = vpop.f32.mrb[0].mxu0
  %v225 = vpop.f32.mrb[0].mxu0
  %226 = vdwg.mxu0
  %v227 = vadd.f32 %v104, %v222
  %v228 = vxor.u32 %v227, 2147483648
  %v229 = vmul.f32 %v228, 1.442695
  %v230 = vpow.pop %v229
  %v231 = vadd.f32 %v230, 1.0
  %v232 = vrcp.pop %v231
  %v233 = vmul.f32 1.0, %v232
  %v234 = vtanh.pop %v227
  %236 = vrot.lane.b32.xlu0 %v169, 32
  %v237 = vpop.permute.xlu0 %236
  %v239 = vmul.f32 %v233, %v237
  %241 = vrot.lane.b32.xlu0 %v234, 64
  %v242 = vpop.permute.xlu0 %241
  %v244 = vmul.f32 %v233, %v242
  %246 = vrot.lane.b32.xlu0 %v244, 32
  %v247 = vpop.permute.xlu0 %246
  %v249 = vadd.f32 %v239, %v247
  %v250 = vtanh.pop %v249
  %252 = vrot.lane.b32.xlu0 %v250, 64
  %v253 = vpop.permute.xlu0 %252
  %v255 = vmul.f32 %v233, %v253
  %v256 = vpack.c.bf16 %v255, %v255
  %258 = vrot.lane.b32.xlu0 %v256, 32
  %v259 = vpop.permute.xlu0 %258
  %v261 = vsel %vm183, %v259, 0
  %263 = vmatprep.subr.bf16.mxu0 0
  %264 = vmatpush1.bf16.msra.mxu0 %v179
  %265 = vmatprep.subr.bf16.mxu0 0
  %266 = vmatpush1.bf16.msra.mxu0 %v180
  %267 = vmatprep.subr.bf16.mxu0 0
  %268 = vmatpush1.bf16.msra.mxu0 0
  %269 = vmatprep.subr.bf16.mxu0 0
  %270 = vmatpush1.bf16.msra.mxu0 0
  %271 = vmatprep.subr.bf16.mxu0 0
  %272 = vmatpush1.bf16.msra.mxu0 0
  %273 = vmatprep.subr.bf16.mxu0 0
  %274 = vmatpush1.bf16.msra.mxu0 0
  %275 = vmatprep.subr.bf16.mxu0 0
  %276 = vmatpush1.bf16.msra.mxu0 0
  %277 = vmatprep.subr.bf16.mxu0 0
  %278 = vmatpush1.bf16.msra.mxu0 0
  %279 = vmatprep.subr.bf16.mxu0 0
  %280 = vmatpush1.bf16.msra.mxu0 0
  %281 = vmatprep.subr.bf16.mxu0 0
  %282 = vmatpush1.bf16.msra.mxu0 0
  %283 = vmatprep.subr.bf16.mxu0 0
  %284 = vmatpush1.bf16.msra.mxu0 0
  %285 = vmatprep.subr.bf16.mxu0 0
  %286 = vmatpush1.bf16.msra.mxu0 0
  %287 = vmatprep.subr.bf16.mxu0 0
  %288 = vmatpush1.bf16.msra.mxu0 0
  %289 = vmatprep.subr.bf16.mxu0 0
  %290 = vmatpush1.bf16.msra.mxu0 0
  %291 = vmatprep.subr.bf16.mxu0 0
  %292 = vmatpush1.bf16.msra.mxu0 0
  %293 = vmatprep.subr.bf16.mxu0 0
  %294 = vmatpush1.bf16.msra.mxu0 0
  %295 = vmatprep.mubr.bf16.mxu0 0
  %296 = vmatmul.mubr.bf16.gmra.mrb[0].mxu0 %v261
  %v297 = vpop.f32.mrb[0].mxu0
  %v298 = vadd.f32 0.0, %v297
  %v299 = vpop.f32.mrb[0].mxu0
  %v300 = vpop.f32.mrb[0].mxu0
  %v301 = vpop.f32.mrb[0].mxu0
  %302 = vdwg.mxu0
  %v304 = vrot.slane %v298, 6
  %v306 = vadd.f32 %v104, %v304
  %v307 = vxor.u32 %v306, 2147483648
  %v308 = vmul.f32 %v307, 1.442695
  %v309 = vpow.pop %v308
  %v310 = vadd.f32 %v309, 1.0
  %v311 = vrcp.pop %v310
  %v312 = vmul.f32 1.0, %v311
  %v313 = vtanh.pop %v306
  %v315 = vrot.slane %v249, 6
  %v317 = vmul.f32 %v312, %v315
  %319 = vrot.lane.b32.xlu0 %v313, 64
  %v320 = vpop.permute.xlu0 %319
  %v322 = vmul.f32 %v312, %v320
  %324 = vrot.lane.b32.xlu0 %v322, 32
  %v325 = vpop.permute.xlu0 %324
  %v327 = vadd.f32 %v317, %v325
  %v328 = vtanh.pop %v327
  %330 = vrot.lane.b32.xlu0 %v328, 64
  %v331 = vpop.permute.xlu0 %330
  %v333 = vmul.f32 %v312, %v331
  %v334 = vpack.c.bf16 %v333, %v333
  %v336 = vrot.slane %v334, 1
  %337 = vrot.lane.b32.xlu0 %v336, 32
  %v338 = vpop.permute.xlu0 %337
  %v340 = vsel %vm183, %v338, 0
  %342 = vmatprep.subr.bf16.mxu0 0
  %343 = vmatpush1.bf16.msra.mxu0 %v179
  %344 = vmatprep.subr.bf16.mxu0 0
  %345 = vmatpush1.bf16.msra.mxu0 %v180
  %346 = vmatprep.subr.bf16.mxu0 0
  %347 = vmatpush1.bf16.msra.mxu0 0
  %348 = vmatprep.subr.bf16.mxu0 0
  %349 = vmatpush1.bf16.msra.mxu0 0
  %350 = vmatprep.subr.bf16.mxu0 0
  %351 = vmatpush1.bf16.msra.mxu0 0
  %352 = vmatprep.subr.bf16.mxu0 0
  %353 = vmatpush1.bf16.msra.mxu0 0
  %354 = vmatprep.subr.bf16.mxu0 0
  %355 = vmatpush1.bf16.msra.mxu0 0
  %356 = vmatprep.subr.bf16.mxu0 0
  %357 = vmatpush1.bf16.msra.mxu0 0
  %358 = vmatprep.subr.bf16.mxu0 0
  %359 = vmatpush1.bf16.msra.mxu0 0
  %360 = vmatprep.subr.bf16.mxu0 0
  %361 = vmatpush1.bf16.msra.mxu0 0
  %362 = vmatprep.subr.bf16.mxu0 0
  %363 = vmatpush1.bf16.msra.mxu0 0
  %364 = vmatprep.subr.bf16.mxu0 0
  %365 = vmatpush1.bf16.msra.mxu0 0
  %366 = vmatprep.subr.bf16.mxu0 0
  %367 = vmatpush1.bf16.msra.mxu0 0
  %368 = vmatprep.subr.bf16.mxu0 0
  %369 = vmatpush1.bf16.msra.mxu0 0
  %370 = vmatprep.subr.bf16.mxu0 0
  %371 = vmatpush1.bf16.msra.mxu0 0
  %372 = vmatprep.subr.bf16.mxu0 0
  %373 = vmatpush1.bf16.msra.mxu0 0
  %374 = vmatprep.mubr.bf16.mxu0 0
  %375 = vmatmul.mubr.bf16.gmra.mrb[0].mxu0 %v340
  %v376 = vpop.f32.mrb[0].mxu0
  %v377 = vadd.f32 0.0, %v376
  %v378 = vpop.f32.mrb[0].mxu0
  %v379 = vpop.f32.mrb[0].mxu0
  %v380 = vpop.f32.mrb[0].mxu0
  %381 = vdwg.mxu0
  %v383 = vrot.slane %v377, 4
  %v385 = vadd.f32 %v104, %v383
  %v386 = vxor.u32 %v385, 2147483648
  %v387 = vmul.f32 %v386, 1.442695
  %v388 = vpow.pop %v387
  %v389 = vadd.f32 %v388, 1.0
  %v390 = vrcp.pop %v389
  %v391 = vmul.f32 1.0, %v390
  %v392 = vtanh.pop %v385
  %v394 = vrot.slane %v327, 6
  %v396 = vmul.f32 %v391, %v394
  %398 = vrot.lane.b32.xlu0 %v392, 64
  %v399 = vpop.permute.xlu0 %398
  %v401 = vmul.f32 %v391, %v399
  %403 = vrot.lane.b32.xlu0 %v401, 32
  %v404 = vpop.permute.xlu0 %403
  %v406 = vadd.f32 %v396, %v404
  %v407 = vtanh.pop %v406
  %409 = vrot.lane.b32.xlu0 %v407, 64
  %v410 = vpop.permute.xlu0 %409
  %v412 = vmul.f32 %v391, %v410
  %v413 = vpack.c.bf16 %v412, %v412
  %v415 = vrot.slane %v413, 2
  %416 = vrot.lane.b32.xlu0 %v415, 32
  %v417 = vpop.permute.xlu0 %416
  %v419 = vsel %vm183, %v417, 0
  %421 = vmatprep.subr.bf16.mxu0 0
  %422 = vmatpush1.bf16.msra.mxu0 %v179
  %423 = vmatprep.subr.bf16.mxu0 0
  %424 = vmatpush1.bf16.msra.mxu0 %v180
  %425 = vmatprep.subr.bf16.mxu0 0
  %426 = vmatpush1.bf16.msra.mxu0 0
  %427 = vmatprep.subr.bf16.mxu0 0
  %428 = vmatpush1.bf16.msra.mxu0 0
  %429 = vmatprep.subr.bf16.mxu0 0
  %430 = vmatpush1.bf16.msra.mxu0 0
  %431 = vmatprep.subr.bf16.mxu0 0
  %432 = vmatpush1.bf16.msra.mxu0 0
  %433 = vmatprep.subr.bf16.mxu0 0
  %434 = vmatpush1.bf16.msra.mxu0 0
  %435 = vmatprep.subr.bf16.mxu0 0
  %436 = vmatpush1.bf16.msra.mxu0 0
  %437 = vmatprep.subr.bf16.mxu0 0
  %438 = vmatpush1.bf16.msra.mxu0 0
  %439 = vmatprep.subr.bf16.mxu0 0
  %440 = vmatpush1.bf16.msra.mxu0 0
  %441 = vmatprep.subr.bf16.mxu0 0
  %442 = vmatpush1.bf16.msra.mxu0 0
  %443 = vmatprep.subr.bf16.mxu0 0
  %444 = vmatpush1.bf16.msra.mxu0 0
  %445 = vmatprep.subr.bf16.mxu0 0
  %446 = vmatpush1.bf16.msra.mxu0 0
  %447 = vmatprep.subr.bf16.mxu0 0
  %448 = vmatpush1.bf16.msra.mxu0 0
  %449 = vmatprep.subr.bf16.mxu0 0
  %450 = vmatpush1.bf16.msra.mxu0 0
  %451 = vmatprep.subr.bf16.mxu0 0
  %452 = vmatpush1.bf16.msra.mxu0 0
  %453 = vmatprep.mubr.bf16.mxu0 0
  %454 = vmatmul.mubr.bf16.gmra.mrb[0].mxu0 %v419
  %v455 = vpop.f32.mrb[0].mxu0
  %v456 = vadd.f32 0.0, %v455
  %v457 = vpop.f32.mrb[0].mxu0
  %v458 = vpop.f32.mrb[0].mxu0
  %v459 = vpop.f32.mrb[0].mxu0
  %460 = vdwg.mxu0
  %v462 = vrot.slane %v456, 2
  %v464 = vadd.f32 %v104, %v462
  %v465 = vxor.u32 %v464, 2147483648
  %v466 = vmul.f32 %v465, 1.442695
  %v467 = vpow.pop %v466
  %v468 = vadd.f32 %v467, 1.0
  %v469 = vrcp.pop %v468
  %v470 = vmul.f32 1.0, %v469
  %v471 = vtanh.pop %v464
  %v473 = vrot.slane %v406, 6
  %v475 = vmul.f32 %v470, %v473
  %477 = vrot.lane.b32.xlu0 %v471, 64
  %v478 = vpop.permute.xlu0 %477
  %v480 = vmul.f32 %v470, %v478
  %482 = vrot.lane.b32.xlu0 %v480, 32
  %v483 = vpop.permute.xlu0 %482
  %v485 = vadd.f32 %v475, %v483
  %v486 = vtanh.pop %v485
  %488 = vrot.lane.b32.xlu0 %v486, 64
  %v489 = vpop.permute.xlu0 %488
  %v491 = vmul.f32 %v470, %v489
  %v492 = vpack.c.bf16 %v491, %v491
  %v494 = vrot.slane %v492, 3
  %495 = vrot.lane.b32.xlu0 %v494, 32
  %v496 = vpop.permute.xlu0 %495
  %v498 = vsel %vm183, %v496, 0
  %500 = vmatprep.subr.bf16.mxu0 0
  %501 = vmatpush1.bf16.msra.mxu0 %v179
  %502 = vmatprep.subr.bf16.mxu0 0
  %503 = vmatpush1.bf16.msra.mxu0 %v180
  %504 = vmatprep.subr.bf16.mxu0 0
  %505 = vmatpush1.bf16.msra.mxu0 0
  %506 = vmatprep.subr.bf16.mxu0 0
  %507 = vmatpush1.bf16.msra.mxu0 0
  %508 = vmatprep.subr.bf16.mxu0 0
  %509 = vmatpush1.bf16.msra.mxu0 0
  %510 = vmatprep.subr.bf16.mxu0 0
  %511 = vmatpush1.bf16.msra.mxu0 0
  %512 = vmatprep.subr.bf16.mxu0 0
  %513 = vmatpush1.bf16.msra.mxu0 0
  %514 = vmatprep.subr.bf16.mxu0 0
  %515 = vmatpush1.bf16.msra.mxu0 0
  %516 = vmatprep.subr.bf16.mxu0 0
  %517 = vmatpush1.bf16.msra.mxu0 0
  %518 = vmatprep.subr.bf16.mxu0 0
  %519 = vmatpush1.bf16.msra.mxu0 0
  %520 = vmatprep.subr.bf16.mxu0 0
  %521 = vmatpush1.bf16.msra.mxu0 0
  %522 = vmatprep.subr.bf16.mxu0 0
  %523 = vmatpush1.bf16.msra.mxu0 0
  %524 = vmatprep.subr.bf16.mxu0 0
  %525 = vmatpush1.bf16.msra.mxu0 0
  %526 = vmatprep.subr.bf16.mxu0 0
  %527 = vmatpush1.bf16.msra.mxu0 0
  %528 = vmatprep.subr.bf16.mxu0 0
  %529 = vmatpush1.bf16.msra.mxu0 0
  %530 = vmatprep.subr.bf16.mxu0 0
  %531 = vmatpush1.bf16.msra.mxu0 0
  %532 = vmatprep.mubr.bf16.mxu0 0
  %533 = vmatmul.mubr.bf16.gmra.mrb[0].mxu0 %v498
  %v534 = vpop.f32.mrb[0].mxu0
  %v535 = vadd.f32 0.0, %v534
  %v536 = vpop.f32.mrb[0].mxu0
  %v537 = vpop.f32.mrb[0].mxu0
  %v538 = vpop.f32.mrb[0].mxu0
  %539 = vdwg.mxu0
  %v540 = vadd.f32 %v107, %v535
  %v541 = vxor.u32 %v540, 2147483648
  %v542 = vmul.f32 %v541, 1.442695
  %v543 = vpow.pop %v542
  %v544 = vadd.f32 %v543, 1.0
  %v545 = vrcp.pop %v544
  %v546 = vmul.f32 1.0, %v545
  %v547 = vtanh.pop %v540
  %v549 = vrot.slane %v485, 6
  %v551 = vmul.f32 %v546, %v549
  %553 = vrot.lane.b32.xlu0 %v547, 64
  %v554 = vpop.permute.xlu0 %553
  %v556 = vmul.f32 %v546, %v554
  %558 = vrot.lane.b32.xlu0 %v556, 32
  %v559 = vpop.permute.xlu0 %558
  %v561 = vadd.f32 %v551, %v559
  %v562 = vtanh.pop %v561
  %564 = vrot.lane.b32.xlu0 %v562, 64
  %v565 = vpop.permute.xlu0 %564
  %v567 = vmul.f32 %v546, %v565
  %v568 = vpack.c.bf16 %v567, %v567
  %570 = vrot.lane.b32.xlu0 %v568, 32
  %v571 = vpop.permute.xlu0 %570
  %v573 = vsel %vm183, %v571, 0
  %575 = vmatprep.subr.bf16.mxu0 0
  %576 = vmatpush1.bf16.msra.mxu0 %v179
  %577 = vmatprep.subr.bf16.mxu0 0
  %578 = vmatpush1.bf16.msra.mxu0 %v180
  %579 = vmatprep.subr.bf16.mxu0 0
  %580 = vmatpush1.bf16.msra.mxu0 0
  %581 = vmatprep.subr.bf16.mxu0 0
  %582 = vmatpush1.bf16.msra.mxu0 0
  %583 = vmatprep.subr.bf16.mxu0 0
  %584 = vmatpush1.bf16.msra.mxu0 0
  %585 = vmatprep.subr.bf16.mxu0 0
  %586 = vmatpush1.bf16.msra.mxu0 0
  %587 = vmatprep.subr.bf16.mxu0 0
  %588 = vmatpush1.bf16.msra.mxu0 0
  %589 = vmatprep.subr.bf16.mxu0 0
  %590 = vmatpush1.bf16.msra.mxu0 0
  %591 = vmatprep.subr.bf16.mxu0 0
  %592 = vmatpush1.bf16.msra.mxu0 0
  %593 = vmatprep.subr.bf16.mxu0 0
  %594 = vmatpush1.bf16.msra.mxu0 0
  %595 = vmatprep.subr.bf16.mxu0 0
  %596 = vmatpush1.bf16.msra.mxu0 0
  %597 = vmatprep.subr.bf16.mxu0 0
  %598 = vmatpush1.bf16.msra.mxu0 0
  %599 = vmatprep.subr.bf16.mxu0 0
  %600 = vmatpush1.bf16.msra.mxu0 0
  %601 = vmatprep.subr.bf16.mxu0 0
  %602 = vmatpush1.bf16.msra.mxu0 0
  %603 = vmatprep.subr.bf16.mxu0 0
  %604 = vmatpush1.bf16.msra.mxu0 0
  %605 = vmatprep.subr.bf16.mxu0 0
  %606 = vmatpush1.bf16.msra.mxu0 0
  %607 = vmatprep.mubr.bf16.mxu0 0
  %608 = vmatmul.mubr.bf16.gmra.mrb[0].mxu0 %v573
  %v609 = vpop.f32.mrb[0].mxu0
  %v610 = vadd.f32 0.0, %v609
  %v611 = vpop.f32.mrb[0].mxu0
  %v612 = vpop.f32.mrb[0].mxu0
  %v613 = vpop.f32.mrb[0].mxu0
  %614 = vdwg.mxu0
  %v616 = vrot.slane %v610, 6
  %v618 = vadd.f32 %v107, %v616
  %v619 = vxor.u32 %v618, 2147483648
  %v620 = vmul.f32 %v619, 1.442695
  %v621 = vpow.pop %v620
  %v622 = vadd.f32 %v621, 1.0
  %v623 = vrcp.pop %v622
  %v624 = vmul.f32 1.0, %v623
  %v625 = vtanh.pop %v618
  %v627 = vrot.slane %v561, 6
  %v629 = vmul.f32 %v624, %v627
  %631 = vrot.lane.b32.xlu0 %v625, 64
  %v632 = vpop.permute.xlu0 %631
  %v634 = vmul.f32 %v624, %v632
  %636 = vrot.lane.b32.xlu0 %v634, 32
  %v637 = vpop.permute.xlu0 %636
  %v639 = vadd.f32 %v629, %v637
  %v640 = vtanh.pop %v639
  %642 = vrot.lane.b32.xlu0 %v640, 64
  %v643 = vpop.permute.xlu0 %642
  %v645 = vmul.f32 %v624, %v643
  %v646 = vpack.c.bf16 %v645, %v645
  %v648 = vrot.slane %v646, 1
  %649 = vrot.lane.b32.xlu0 %v648, 32
  %v650 = vpop.permute.xlu0 %649
  %v652 = vsel %vm183, %v650, 0
  %654 = vmatprep.subr.bf16.mxu0 0
  %655 = vmatpush1.bf16.msra.mxu0 %v179
  %656 = vmatprep.subr.bf16.mxu0 0
  %657 = vmatpush1.bf16.msra.mxu0 %v180
  %658 = vmatprep.subr.bf16.mxu0 0
  %659 = vmatpush1.bf16.msra.mxu0 0
  %660 = vmatprep.subr.bf16.mxu0 0
  %661 = vmatpush1.bf16.msra.mxu0 0
  %662 = vmatprep.subr.bf16.mxu0 0
  %663 = vmatpush1.bf16.msra.mxu0 0
  %664 = vmatprep.subr.bf16.mxu0 0
  %665 = vmatpush1.bf16.msra.mxu0 0
  %666 = vmatprep.subr.bf16.mxu0 0
  %667 = vmatpush1.bf16.msra.mxu0 0
  %668 = vmatprep.subr.bf16.mxu0 0
  %669 = vmatpush1.bf16.msra.mxu0 0
  %670 = vmatprep.subr.bf16.mxu0 0
  %671 = vmatpush1.bf16.msra.mxu0 0
  %672 = vmatprep.subr.bf16.mxu0 0
  %673 = vmatpush1.bf16.msra.mxu0 0
  %674 = vmatprep.subr.bf16.mxu0 0
  %675 = vmatpush1.bf16.msra.mxu0 0
  %676 = vmatprep.subr.bf16.mxu0 0
  %677 = vmatpush1.bf16.msra.mxu0 0
  %678 = vmatprep.subr.bf16.mxu0 0
  %679 = vmatpush1.bf16.msra.mxu0 0
  %680 = vmatprep.subr.bf16.mxu0 0
  %681 = vmatpush1.bf16.msra.mxu0 0
  %682 = vmatprep.subr.bf16.mxu0 0
  %683 = vmatpush1.bf16.msra.mxu0 0
  %684 = vmatprep.subr.bf16.mxu0 0
  %685 = vmatpush1.bf16.msra.mxu0 0
  %686 = vmatprep.mubr.bf16.mxu0 0
  %687 = vmatmul.mubr.bf16.gmra.mrb[0].mxu0 %v652
  %v688 = vpop.f32.mrb[0].mxu0
  %v689 = vadd.f32 0.0, %v688
  %v690 = vpop.f32.mrb[0].mxu0
  %v691 = vpop.f32.mrb[0].mxu0
  %v692 = vpop.f32.mrb[0].mxu0
  %693 = vdwg.mxu0
  %v695 = vrot.slane %v689, 4
  %v697 = vadd.f32 %v107, %v695
  %v698 = vxor.u32 %v697, 2147483648
  %v699 = vmul.f32 %v698, 1.442695
  %v700 = vpow.pop %v699
  %v701 = vadd.f32 %v700, 1.0
  %v702 = vrcp.pop %v701
  %v703 = vmul.f32 1.0, %v702
  %v704 = vtanh.pop %v697
  %v706 = vrot.slane %v639, 6
  %v708 = vmul.f32 %v703, %v706
  %710 = vrot.lane.b32.xlu0 %v704, 64
  %v711 = vpop.permute.xlu0 %710
  %v713 = vmul.f32 %v703, %v711
  %715 = vrot.lane.b32.xlu0 %v713, 32
  %v716 = vpop.permute.xlu0 %715
  %v718 = vadd.f32 %v708, %v716
  %v719 = vtanh.pop %v718
  %721 = vrot.lane.b32.xlu0 %v719, 64
  %v722 = vpop.permute.xlu0 %721
  %v724 = vmul.f32 %v703, %v722
  %v725 = vpack.c.bf16 %v724, %v724
  %v727 = vrot.slane %v725, 2
  %728 = vrot.lane.b32.xlu0 %v727, 32
  %v729 = vpop.permute.xlu0 %728
  %v731 = vsel %vm183, %v729, 0
  %733 = vmatprep.subr.bf16.mxu0 0
  %734 = vmatpush1.bf16.msra.mxu0 %v179
  %735 = vmatprep.subr.bf16.mxu0 0
  %736 = vmatpush1.bf16.msra.mxu0 %v180
  %737 = vmatprep.subr.bf16.mxu0 0
  %738 = vmatpush1.bf16.msra.mxu0 0
  %739 = vmatprep.subr.bf16.mxu0 0
  %740 = vmatpush1.bf16.msra.mxu0 0
  %741 = vmatprep.subr.bf16.mxu0 0
  %742 = vmatpush1.bf16.msra.mxu0 0
  %743 = vmatprep.subr.bf16.mxu0 0
  %744 = vmatpush1.bf16.msra.mxu0 0
  %745 = vmatprep.subr.bf16.mxu0 0
  %746 = vmatpush1.bf16.msra.mxu0 0
  %747 = vmatprep.subr.bf16.mxu0 0
  %748 = vmatpush1.bf16.msra.mxu0 0
  %749 = vmatprep.subr.bf16.mxu0 0
  %750 = vmatpush1.bf16.msra.mxu0 0
  %751 = vmatprep.subr.bf16.mxu0 0
  %752 = vmatpush1.bf16.msra.mxu0 0
  %753 = vmatprep.subr.bf16.mxu0 0
  %754 = vmatpush1.bf16.msra.mxu0 0
  %755 = vmatprep.subr.bf16.mxu0 0
  %756 = vmatpush1.bf16.msra.mxu0 0
  %757 = vmatprep.subr.bf16.mxu0 0
  %758 = vmatpush1.bf16.msra.mxu0 0
  %759 = vmatprep.subr.bf16.mxu0 0
  %760 = vmatpush1.bf16.msra.mxu0 0
  %761 = vmatprep.subr.bf16.mxu0 0
  %762 = vmatpush1.bf16.msra.mxu0 0
  %763 = vmatprep.subr.bf16.mxu0 0
  %764 = vmatpush1.bf16.msra.mxu0 0
  %765 = vmatprep.mubr.bf16.mxu0 0
  %766 = vmatmul.mubr.bf16.gmra.mrb[0].mxu0 %v731
  %v767 = vpop.f32.mrb[0].mxu0
  %v768 = vadd.f32 0.0, %v767
  %v769 = vpop.f32.mrb[0].mxu0
  %v770 = vpop.f32.mrb[0].mxu0
  %v771 = vpop.f32.mrb[0].mxu0
  %772 = vdwg.mxu0
  %v774 = vrot.slane %v768, 2
  %v776 = vadd.f32 %v107, %v774
  %v777 = vxor.u32 %v776, 2147483648
  %v778 = vmul.f32 %v777, 1.442695
  %v779 = vpow.pop %v778
  %v780 = vadd.f32 %v779, 1.0
  %v781 = vrcp.pop %v780
  %v782 = vmul.f32 1.0, %v781
  %v783 = vtanh.pop %v776
  %v785 = vrot.slane %v718, 6
  %v787 = vmul.f32 %v782, %v785
  %789 = vrot.lane.b32.xlu0 %v783, 64
  %v790 = vpop.permute.xlu0 %789
  %v792 = vmul.f32 %v782, %v790
  %794 = vrot.lane.b32.xlu0 %v792, 32
  %v795 = vpop.permute.xlu0 %794
  %v797 = vadd.f32 %v787, %v795
  %v798 = vtanh.pop %v797
  %800 = vrot.lane.b32.xlu0 %v798, 64
  %v801 = vpop.permute.xlu0 %800
  %v803 = vmul.f32 %v782, %v801
  %v804 = vpack.c.bf16 %v803, %v803
  %v806 = vrot.slane %v804, 3
  %807 = vrot.lane.b32.xlu0 %v806, 32
  %v808 = vpop.permute.xlu0 %807
  %v813 = vunpack.c.l.b16 %v46
  %v814 = vunpack.c.l.b16 %v47
  %v815 = vunpack.c.l.b16 %v48
  %v816 = vunpack.c.l.b16 %v49
  %v817 = vpack.c.b16 %v814, %v813
  %v818 = vpack.c.b16 %v816, %v815
  %v822 = vsel %vm183, %v808, 0
  %824 = vmatprep.subr.bf16.mxu0 0
  %825 = vmatpush1.bf16.msra.mxu0 %v817
  %826 = vmatprep.subr.bf16.mxu0 0
  %827 = vmatpush1.bf16.msra.mxu0 %v818
  %828 = vmatprep.subr.bf16.mxu0 0
  %829 = vmatpush1.bf16.msra.mxu0 0
  %830 = vmatprep.subr.bf16.mxu0 0
  %831 = vmatpush1.bf16.msra.mxu0 0
  %832 = vmatprep.subr.bf16.mxu0 0
  %833 = vmatpush1.bf16.msra.mxu0 0
  %834 = vmatprep.subr.bf16.mxu0 0
  %835 = vmatpush1.bf16.msra.mxu0 0
  %836 = vmatprep.subr.bf16.mxu0 0
  %837 = vmatpush1.bf16.msra.mxu0 0
  %838 = vmatprep.subr.bf16.mxu0 0
  %839 = vmatpush1.bf16.msra.mxu0 0
  %840 = vmatprep.subr.bf16.mxu0 0
  %841 = vmatpush1.bf16.msra.mxu0 0
  %842 = vmatprep.subr.bf16.mxu0 0
  %843 = vmatpush1.bf16.msra.mxu0 0
  %844 = vmatprep.subr.bf16.mxu0 0
  %845 = vmatpush1.bf16.msra.mxu0 0
  %846 = vmatprep.subr.bf16.mxu0 0
  %847 = vmatpush1.bf16.msra.mxu0 0
  %848 = vmatprep.subr.bf16.mxu0 0
  %849 = vmatpush1.bf16.msra.mxu0 0
  %850 = vmatprep.subr.bf16.mxu0 0
  %851 = vmatpush1.bf16.msra.mxu0 0
  %852 = vmatprep.subr.bf16.mxu0 0
  %853 = vmatpush1.bf16.msra.mxu0 0
  %854 = vmatprep.subr.bf16.mxu0 0
  %855 = vmatpush1.bf16.msra.mxu0 0
  %856 = vmatprep.mubr.bf16.mxu0 0
  %857 = vmatmul.mubr.bf16.gmra.mrb[0].mxu0 %v822
  %v858 = vpop.f32.mrb[0].mxu0
  %v859 = vadd.f32 0.0, %v858
  %v860 = vpop.f32.mrb[0].mxu0
  %v861 = vpop.f32.mrb[0].mxu0
  %v862 = vpop.f32.mrb[0].mxu0
  %863 = vdwg.mxu0
  %v864 = vadd.f32 %v162, %v859
  %v865 = vxor.u32 %v864, 2147483648
  %v866 = vmul.f32 %v865, 1.442695
  %v867 = vpow.pop %v866
  %v868 = vadd.f32 %v867, 1.0
  %v869 = vrcp.pop %v868
  %v870 = vmul.f32 1.0, %v869
  %v871 = vtanh.pop %v864
  %v873 = vrot.slane %v797, 6
  %v875 = vmul.f32 %v870, %v873
  %877 = vrot.lane.b32.xlu0 %v871, 64
  %v878 = vpop.permute.xlu0 %877
  %v880 = vmul.f32 %v870, %v878
  %882 = vrot.lane.b32.xlu0 %v880, 32
  %v883 = vpop.permute.xlu0 %882
  %v885 = vadd.f32 %v875, %v883
  %v886 = vtanh.pop %v885
  %888 = vrot.lane.b32.xlu0 %v886, 64
  %v889 = vpop.permute.xlu0 %888
  %v891 = vmul.f32 %v870, %v889
  %v892 = vpack.c.bf16 %v891, %v891
  %894 = vrot.lane.b32.xlu0 %v892, 32
  %v895 = vpop.permute.xlu0 %894
  %v897 = vsel %vm183, %v895, 0
  %899 = vmatprep.subr.bf16.mxu0 0
  %900 = vmatpush1.bf16.msra.mxu0 %v817
  %901 = vmatprep.subr.bf16.mxu0 0
  %902 = vmatpush1.bf16.msra.mxu0 %v818
  %903 = vmatprep.subr.bf16.mxu0 0
  %904 = vmatpush1.bf16.msra.mxu0 0
  %905 = vmatprep.subr.bf16.mxu0 0
  %906 = vmatpush1.bf16.msra.mxu0 0
  %907 = vmatprep.subr.bf16.mxu0 0
  %908 = vmatpush1.bf16.msra.mxu0 0
  %909 = vmatprep.subr.bf16.mxu0 0
  %910 = vmatpush1.bf16.msra.mxu0 0
  %911 = vmatprep.subr.bf16.mxu0 0
  %912 = vmatpush1.bf16.msra.mxu0 0
  %913 = vmatprep.subr.bf16.mxu0 0
  %914 = vmatpush1.bf16.msra.mxu0 0
  %915 = vmatprep.subr.bf16.mxu0 0
  %916 = vmatpush1.bf16.msra.mxu0 0
  %917 = vmatprep.subr.bf16.mxu0 0
  %918 = vmatpush1.bf16.msra.mxu0 0
  %919 = vmatprep.subr.bf16.mxu0 0
  %920 = vmatpush1.bf16.msra.mxu0 0
  %921 = vmatprep.subr.bf16.mxu0 0
  %922 = vmatpush1.bf16.msra.mxu0 0
  %923 = vmatprep.subr.bf16.mxu0 0
  %924 = vmatpush1.bf16.msra.mxu0 0
  %925 = vmatprep.subr.bf16.mxu0 0
  %926 = vmatpush1.bf16.msra.mxu0 0
  %927 = vmatprep.subr.bf16.mxu0 0
  %928 = vmatpush1.bf16.msra.mxu0 0
  %929 = vmatprep.subr.bf16.mxu0 0
  %930 = vmatpush1.bf16.msra.mxu0 0
  %931 = vmatprep.mubr.bf16.mxu0 0
  %932 = vmatmul.mubr.bf16.gmra.mrb[0].mxu0 %v897
  %v933 = vpop.f32.mrb[0].mxu0
  %v934 = vadd.f32 0.0, %v933
  %v935 = vpop.f32.mrb[0].mxu0
  %v936 = vpop.f32.mrb[0].mxu0
  %v937 = vpop.f32.mrb[0].mxu0
  %938 = vdwg.mxu0
  %v940 = vrot.slane %v934, 6
  %v942 = vadd.f32 %v162, %v940
  %v943 = vxor.u32 %v942, 2147483648
  %v944 = vmul.f32 %v943, 1.442695
  %v945 = vpow.pop %v944
  %v946 = vadd.f32 %v945, 1.0
  %v947 = vrcp.pop %v946
  %v948 = vmul.f32 1.0, %v947
  %v949 = vtanh.pop %v942
  %v951 = vrot.slane %v885, 6
  %v953 = vmul.f32 %v948, %v951
  %955 = vrot.lane.b32.xlu0 %v949, 64
  %v956 = vpop.permute.xlu0 %955
  %v958 = vmul.f32 %v948, %v956
  %960 = vrot.lane.b32.xlu0 %v958, 32
  %v961 = vpop.permute.xlu0 %960
  %v963 = vadd.f32 %v953, %v961
  %v964 = vtanh.pop %v963
  %966 = vrot.lane.b32.xlu0 %v964, 64
  %v967 = vpop.permute.xlu0 %966
  %v969 = vmul.f32 %v948, %v967
  %v970 = vpack.c.bf16 %v969, %v969
  %v972 = vrot.slane %v970, 1
  %973 = vrot.lane.b32.xlu0 %v972, 32
  %v974 = vpop.permute.xlu0 %973
  %v976 = vsel %vm183, %v974, 0
  %978 = vmatprep.subr.bf16.mxu0 0
  %979 = vmatpush1.bf16.msra.mxu0 %v817
  %980 = vmatprep.subr.bf16.mxu0 0
  %981 = vmatpush1.bf16.msra.mxu0 %v818
  %982 = vmatprep.subr.bf16.mxu0 0
  %983 = vmatpush1.bf16.msra.mxu0 0
  %984 = vmatprep.subr.bf16.mxu0 0
  %985 = vmatpush1.bf16.msra.mxu0 0
  %986 = vmatprep.subr.bf16.mxu0 0
  %987 = vmatpush1.bf16.msra.mxu0 0
  %988 = vmatprep.subr.bf16.mxu0 0
  %989 = vmatpush1.bf16.msra.mxu0 0
  %990 = vmatprep.subr.bf16.mxu0 0
  %991 = vmatpush1.bf16.msra.mxu0 0
  %992 = vmatprep.subr.bf16.mxu0 0
  %993 = vmatpush1.bf16.msra.mxu0 0
  %994 = vmatprep.subr.bf16.mxu0 0
  %995 = vmatpush1.bf16.msra.mxu0 0
  %996 = vmatprep.subr.bf16.mxu0 0
  %997 = vmatpush1.bf16.msra.mxu0 0
  %998 = vmatprep.subr.bf16.mxu0 0
  %999 = vmatpush1.bf16.msra.mxu0 0
  %1000 = vmatprep.subr.bf16.mxu0 0
  %1001 = vmatpush1.bf16.msra.mxu0 0
  %1002 = vmatprep.subr.bf16.mxu0 0
  %1003 = vmatpush1.bf16.msra.mxu0 0
  %1004 = vmatprep.subr.bf16.mxu0 0
  %1005 = vmatpush1.bf16.msra.mxu0 0
  %1006 = vmatprep.subr.bf16.mxu0 0
  %1007 = vmatpush1.bf16.msra.mxu0 0
  %1008 = vmatprep.subr.bf16.mxu0 0
  %1009 = vmatpush1.bf16.msra.mxu0 0
  %1010 = vmatprep.mubr.bf16.mxu0 0
  %1011 = vmatmul.mubr.bf16.gmra.mrb[0].mxu0 %v976
  %v1012 = vpop.f32.mrb[0].mxu0
  %v1013 = vadd.f32 0.0, %v1012
  %v1014 = vpop.f32.mrb[0].mxu0
  %v1015 = vpop.f32.mrb[0].mxu0
  %v1016 = vpop.f32.mrb[0].mxu0
  %1017 = vdwg.mxu0
  %v1019 = vrot.slane %v1013, 4
  %v1021 = vadd.f32 %v162, %v1019
  %v1022 = vxor.u32 %v1021, 2147483648
  %v1023 = vmul.f32 %v1022, 1.442695
  %v1024 = vpow.pop %v1023
  %v1025 = vadd.f32 %v1024, 1.0
  %v1026 = vrcp.pop %v1025
  %v1027 = vmul.f32 1.0, %v1026
  %v1028 = vtanh.pop %v1021
  %v1030 = vrot.slane %v963, 6
  %v1032 = vmul.f32 %v1027, %v1030
  %1034 = vrot.lane.b32.xlu0 %v1028, 64
  %v1035 = vpop.permute.xlu0 %1034
  %v1037 = vmul.f32 %v1027, %v1035
  %1039 = vrot.lane.b32.xlu0 %v1037, 32
  %v1040 = vpop.permute.xlu0 %1039
  %v1042 = vadd.f32 %v1032, %v1040
  %v1043 = vtanh.pop %v1042
  %1045 = vrot.lane.b32.xlu0 %v1043, 64
  %v1046 = vpop.permute.xlu0 %1045
  %v1048 = vmul.f32 %v1027, %v1046
  %v1049 = vpack.c.bf16 %v1048, %v1048
  %v1051 = vrot.slane %v1049, 2
  %1052 = vrot.lane.b32.xlu0 %v1051, 32
  %v1053 = vpop.permute.xlu0 %1052
  %v1055 = vsel %vm183, %v1053, 0
  %1057 = vmatprep.subr.bf16.mxu0 0
  %1058 = vmatpush1.bf16.msra.mxu0 %v817
  %1059 = vmatprep.subr.bf16.mxu0 0
  %1060 = vmatpush1.bf16.msra.mxu0 %v818
  %1061 = vmatprep.subr.bf16.mxu0 0
  %1062 = vmatpush1.bf16.msra.mxu0 0
  %1063 = vmatprep.subr.bf16.mxu0 0
  %1064 = vmatpush1.bf16.msra.mxu0 0
  %1065 = vmatprep.subr.bf16.mxu0 0
  %1066 = vmatpush1.bf16.msra.mxu0 0
  %1067 = vmatprep.subr.bf16.mxu0 0
  %1068 = vmatpush1.bf16.msra.mxu0 0
  %1069 = vmatprep.subr.bf16.mxu0 0
  %1070 = vmatpush1.bf16.msra.mxu0 0
  %1071 = vmatprep.subr.bf16.mxu0 0
  %1072 = vmatpush1.bf16.msra.mxu0 0
  %1073 = vmatprep.subr.bf16.mxu0 0
  %1074 = vmatpush1.bf16.msra.mxu0 0
  %1075 = vmatprep.subr.bf16.mxu0 0
  %1076 = vmatpush1.bf16.msra.mxu0 0
  %1077 = vmatprep.subr.bf16.mxu0 0
  %1078 = vmatpush1.bf16.msra.mxu0 0
  %1079 = vmatprep.subr.bf16.mxu0 0
  %1080 = vmatpush1.bf16.msra.mxu0 0
  %1081 = vmatprep.subr.bf16.mxu0 0
  %1082 = vmatpush1.bf16.msra.mxu0 0
  %1083 = vmatprep.subr.bf16.mxu0 0
  %1084 = vmatpush1.bf16.msra.mxu0 0
  %1085 = vmatprep.subr.bf16.mxu0 0
  %1086 = vmatpush1.bf16.msra.mxu0 0
  %1087 = vmatprep.subr.bf16.mxu0 0
  %1088 = vmatpush1.bf16.msra.mxu0 0
  %1089 = vmatprep.mubr.bf16.mxu0 0
  %1090 = vmatmul.mubr.bf16.gmra.mrb[0].mxu0 %v1055
  %v1091 = vpop.f32.mrb[0].mxu0
  %v1092 = vadd.f32 0.0, %v1091
  %v1093 = vpop.f32.mrb[0].mxu0
  %v1094 = vpop.f32.mrb[0].mxu0
  %v1095 = vpop.f32.mrb[0].mxu0
  %1096 = vdwg.mxu0
  %v1098 = vrot.slane %v1092, 2
  %v1100 = vadd.f32 %v162, %v1098
  %v1101 = vxor.u32 %v1100, 2147483648
  %v1102 = vmul.f32 %v1101, 1.442695
  %v1103 = vpow.pop %v1102
  %v1104 = vadd.f32 %v1103, 1.0
  %v1105 = vrcp.pop %v1104
  %v1106 = vmul.f32 1.0, %v1105
  %v1107 = vtanh.pop %v1100
  %v1109 = vrot.slane %v1042, 6
  %v1111 = vmul.f32 %v1106, %v1109
  %1113 = vrot.lane.b32.xlu0 %v1107, 64
  %v1114 = vpop.permute.xlu0 %1113
  %v1116 = vmul.f32 %v1106, %v1114
  %1118 = vrot.lane.b32.xlu0 %v1116, 32
  %v1119 = vpop.permute.xlu0 %1118
  %v1121 = vadd.f32 %v1111, %v1119
  %v1122 = vtanh.pop %v1121
  %1124 = vrot.lane.b32.xlu0 %v1122, 64
  %v1125 = vpop.permute.xlu0 %1124
  %v1127 = vmul.f32 %v1106, %v1125
  %v1128 = vpack.c.bf16 %v1127, %v1127
  %v1130 = vrot.slane %v1128, 3
  %1131 = vrot.lane.b32.xlu0 %v1130, 32
  %v1132 = vpop.permute.xlu0 %1131
  %v1134 = vsel %vm183, %v1132, 0
  %1136 = vmatprep.subr.bf16.mxu0 0
  %1137 = vmatpush1.bf16.msra.mxu0 %v817
  %1138 = vmatprep.subr.bf16.mxu0 0
  %1139 = vmatpush1.bf16.msra.mxu0 %v818
  %1140 = vmatprep.subr.bf16.mxu0 0
  %1141 = vmatpush1.bf16.msra.mxu0 0
  %1142 = vmatprep.subr.bf16.mxu0 0
  %1143 = vmatpush1.bf16.msra.mxu0 0
  %1144 = vmatprep.subr.bf16.mxu0 0
  %1145 = vmatpush1.bf16.msra.mxu0 0
  %1146 = vmatprep.subr.bf16.mxu0 0
  %1147 = vmatpush1.bf16.msra.mxu0 0
  %1148 = vmatprep.subr.bf16.mxu0 0
  %1149 = vmatpush1.bf16.msra.mxu0 0
  %1150 = vmatprep.subr.bf16.mxu0 0
  %1151 = vmatpush1.bf16.msra.mxu0 0
  %1152 = vmatprep.subr.bf16.mxu0 0
  %1153 = vmatpush1.bf16.msra.mxu0 0
  %1154 = vmatprep.subr.bf16.mxu0 0
  %1155 = vmatpush1.bf16.msra.mxu0 0
  %1156 = vmatprep.subr.bf16.mxu0 0
  %1157 = vmatpush1.bf16.msra.mxu0 0
  %1158 = vmatprep.subr.bf16.mxu0 0
  %1159 = vmatpush1.bf16.msra.mxu0 0
  %1160 = vmatprep.subr.bf16.mxu0 0
  %1161 = vmatpush1.bf16.msra.mxu0 0
  %1162 = vmatprep.subr.bf16.mxu0 0
  %1163 = vmatpush1.bf16.msra.mxu0 0
  %1164 = vmatprep.subr.bf16.mxu0 0
  %1165 = vmatpush1.bf16.msra.mxu0 0
  %1166 = vmatprep.subr.bf16.mxu0 0
  %1167 = vmatpush1.bf16.msra.mxu0 0
  %1168 = vmatprep.mubr.bf16.mxu0 0
  %1169 = vmatmul.mubr.bf16.gmra.mrb[0].mxu0 %v1134
  %v1170 = vpop.f32.mrb[0].mxu0
  %v1171 = vadd.f32 0.0, %v1170
  %v1172 = vpop.f32.mrb[0].mxu0
  %v1173 = vpop.f32.mrb[0].mxu0
  %v1174 = vpop.f32.mrb[0].mxu0
  %1175 = vdwg.mxu0
  %v1176 = vadd.f32 %v165, %v1171
  %v1177 = vxor.u32 %v1176, 2147483648
  %v1178 = vmul.f32 %v1177, 1.442695
  %v1179 = vpow.pop %v1178
  %v1180 = vadd.f32 %v1179, 1.0
  %v1181 = vrcp.pop %v1180
  %v1182 = vmul.f32 1.0, %v1181
  %v1183 = vtanh.pop %v1176
  %v1185 = vrot.slane %v1121, 6
  %v1187 = vmul.f32 %v1182, %v1185
  %1189 = vrot.lane.b32.xlu0 %v1183, 64
  %v1190 = vpop.permute.xlu0 %1189
  %v1192 = vmul.f32 %v1182, %v1190
  %1194 = vrot.lane.b32.xlu0 %v1192, 32
  %v1195 = vpop.permute.xlu0 %1194
  %v1197 = vadd.f32 %v1187, %v1195
  %v1198 = vtanh.pop %v1197
  %1200 = vrot.lane.b32.xlu0 %v1198, 64
  %v1201 = vpop.permute.xlu0 %1200
  %v1203 = vmul.f32 %v1182, %v1201
  %v1204 = vpack.c.bf16 %v1203, %v1203
  %1206 = vrot.lane.b32.xlu0 %v1204, 32
  %v1207 = vpop.permute.xlu0 %1206
  %v1209 = vsel %vm183, %v1207, 0
  %1211 = vmatprep.subr.bf16.mxu0 0
  %1212 = vmatpush1.bf16.msra.mxu0 %v817
  %1213 = vmatprep.subr.bf16.mxu0 0
  %1214 = vmatpush1.bf16.msra.mxu0 %v818
  %1215 = vmatprep.subr.bf16.mxu0 0
  %1216 = vmatpush1.bf16.msra.mxu0 0
  %1217 = vmatprep.subr.bf16.mxu0 0
  %1218 = vmatpush1.bf16.msra.mxu0 0
  %1219 = vmatprep.subr.bf16.mxu0 0
  %1220 = vmatpush1.bf16.msra.mxu0 0
  %1221 = vmatprep.subr.bf16.mxu0 0
  %1222 = vmatpush1.bf16.msra.mxu0 0
  %1223 = vmatprep.subr.bf16.mxu0 0
  %1224 = vmatpush1.bf16.msra.mxu0 0
  %1225 = vmatprep.subr.bf16.mxu0 0
  %1226 = vmatpush1.bf16.msra.mxu0 0
  %1227 = vmatprep.subr.bf16.mxu0 0
  %1228 = vmatpush1.bf16.msra.mxu0 0
  %1229 = vmatprep.subr.bf16.mxu0 0
  %1230 = vmatpush1.bf16.msra.mxu0 0
  %1231 = vmatprep.subr.bf16.mxu0 0
  %1232 = vmatpush1.bf16.msra.mxu0 0
  %1233 = vmatprep.subr.bf16.mxu0 0
  %1234 = vmatpush1.bf16.msra.mxu0 0
  %1235 = vmatprep.subr.bf16.mxu0 0
  %1236 = vmatpush1.bf16.msra.mxu0 0
  %1237 = vmatprep.subr.bf16.mxu0 0
  %1238 = vmatpush1.bf16.msra.mxu0 0
  %1239 = vmatprep.subr.bf16.mxu0 0
  %1240 = vmatpush1.bf16.msra.mxu0 0
  %1241 = vmatprep.subr.bf16.mxu0 0
  %1242 = vmatpush1.bf16.msra.mxu0 0
  %1243 = vmatprep.mubr.bf16.mxu0 0
  %1244 = vmatmul.mubr.bf16.gmra.mrb[0].mxu0 %v1209
  %v1245 = vpop.f32.mrb[0].mxu0
  %v1246 = vadd.f32 0.0, %v1245
  %v1247 = vpop.f32.mrb[0].mxu0
  %v1248 = vpop.f32.mrb[0].mxu0
  %v1249 = vpop.f32.mrb[0].mxu0
  %1250 = vdwg.mxu0
  %v1252 = vrot.slane %v1246, 6
  %v1254 = vadd.f32 %v165, %v1252
  %v1255 = vxor.u32 %v1254, 2147483648
  %v1256 = vmul.f32 %v1255, 1.442695
  %v1257 = vpow.pop %v1256
  %v1258 = vadd.f32 %v1257, 1.0
  %v1259 = vrcp.pop %v1258
  %v1260 = vmul.f32 1.0, %v1259
  %v1261 = vtanh.pop %v1254
  %v1263 = vrot.slane %v1197, 6
  %v1265 = vmul.f32 %v1260, %v1263
  %1267 = vrot.lane.b32.xlu0 %v1261, 64
  %v1268 = vpop.permute.xlu0 %1267
  %v1270 = vmul.f32 %v1260, %v1268
  %1272 = vrot.lane.b32.xlu0 %v1270, 32
  %v1273 = vpop.permute.xlu0 %1272
  %v1275 = vadd.f32 %v1265, %v1273
  %v1276 = vtanh.pop %v1275
  %1278 = vrot.lane.b32.xlu0 %v1276, 64
  %v1279 = vpop.permute.xlu0 %1278
  %v1281 = vmul.f32 %v1260, %v1279
  %v1282 = vsel %vm65, %v891, %v969
  %vm1283 = vcmask 1043456
  %v1284 = vsel %vm1283, %v1282, %v1048
  %vm1285 = vcmask 1045504
  %v1286 = vsel %vm1285, %v1284, %v1127
  %v1287 = vsel %vm65, %v1203, %v1281
  %v1288 = vpack.c.bf16 %v1287, %v1286
  %v1289 = vld [vmem:[%s10] sm:$0xf]
  %v1290 = vld [vmem:[%s10 + $0x4] sm:$0xf]
  %v1291 = vld [vmem:[%s10 + $0x8] sm:$0xf]
  %v1292 = vld [vmem:[%s10 + $0xc] sm:$0xf]
  %v1293 = vld [vmem:[%s11] sm:$0x1]
  %v1295 = vlaneseq
  %v1296 = vshrl.u32 %v1295, 7
  %v1297 = vsub.s32 0, %v1296
  %v1298 = vrot.slane %v1293, %v1297
  %1301 = vrot.lane.b32.xlu0 %v1288, 32
  %v1302 = vpop.permute.xlu0 %1301
  %v1307 = vunpack.c.l.b16 %v1289
  %v1308 = vunpack.c.l.b16 %v1290
  %v1309 = vunpack.c.l.b16 %v1291
  %v1310 = vunpack.c.l.b16 %v1292
  %v1311 = vpack.c.b16 %v1308, %v1307
  %v1312 = vpack.c.b16 %v1310, %v1309
  %v1316 = vsel %vm183, %v1302, 0
  %1318 = vmatprep.subr.bf16.mxu0 0
  %1319 = vmatpush1.bf16.msra.mxu0 %v1311
  %1320 = vmatprep.subr.bf16.mxu0 0
  %1321 = vmatpush1.bf16.msra.mxu0 %v1312
  %1322 = vmatprep.subr.bf16.mxu0 0
  %1323 = vmatpush1.bf16.msra.mxu0 0
  %1324 = vmatprep.subr.bf16.mxu0 0
  %1325 = vmatpush1.bf16.msra.mxu0 0
  %1326 = vmatprep.subr.bf16.mxu0 0
  %1327 = vmatpush1.bf16.msra.mxu0 0
  %1328 = vmatprep.subr.bf16.mxu0 0
  %1329 = vmatpush1.bf16.msra.mxu0 0
  %1330 = vmatprep.subr.bf16.mxu0 0
  %1331 = vmatpush1.bf16.msra.mxu0 0
  %1332 = vmatprep.subr.bf16.mxu0 0
  %1333 = vmatpush1.bf16.msra.mxu0 0
  %1334 = vmatprep.subr.bf16.mxu0 0
  %1335 = vmatpush1.bf16.msra.mxu0 0
  %1336 = vmatprep.subr.bf16.mxu0 0
  %1337 = vmatpush1.bf16.msra.mxu0 0
  %1338 = vmatprep.subr.bf16.mxu0 0
  %1339 = vmatpush1.bf16.msra.mxu0 0
  %1340 = vmatprep.subr.bf16.mxu0 0
  %1341 = vmatpush1.bf16.msra.mxu0 0
  %1342 = vmatprep.subr.bf16.mxu0 0
  %1343 = vmatpush1.bf16.msra.mxu0 0
  %1344 = vmatprep.subr.bf16.mxu0 0
  %1345 = vmatpush1.bf16.msra.mxu0 0
  %1346 = vmatprep.subr.bf16.mxu0 0
  %1347 = vmatpush1.bf16.msra.mxu0 0
  %1348 = vmatprep.subr.bf16.mxu0 0
  %1349 = vmatpush1.bf16.msra.mxu0 0
  %1350 = vmatprep.mubr.bf16.mxu0 0
  %1351 = vmatmul.mubr.bf16.gmra.mrb[0].mxu0 %v1316
  %v1352 = vpop.f32.mrb[0].mxu0
  %v1353 = vadd.f32 %v1298, %v1352
  %v1354 = vpop.f32.mrb[0].mxu0
  %v1355 = vpop.f32.mrb[0].mxu0
  %v1356 = vadd.f32 %v1298, %v1355
  %v1357 = vpop.f32.mrb[0].mxu0
  %1358 = vdwg.mxu0
  %v1359 = vlaneseq
  %v1360 = vand.u32 %v1359, 127
  %vm1361 = vcmp.lt.s32.totalorder %v1360, 2
  %v1362 = vtanh.pop %v1353
  %v1363 = vtanh.pop %v1356
  %v1364 = vxor.u32 %v1353, 2147483648
  %v1365 = vxor.u32 %v1356, 2147483648
  %v1366 = vmul.f32 %v1364, 1.442695
  %v1367 = vpow.pop %v1366
  %v1368 = vmul.f32 %v1365, 1.442695
  %v1369 = vpow.pop %v1368
  %v1370 = vadd.f32 %v1367, 1.0
  %v1371 = vadd.f32 %v1369, 1.0
  %v1372 = vrcp.pop %v1370
  %v1373 = vmul.f32 1.0, %v1372
  %v1374 = vrcp.pop %v1371
  %v1375 = vmul.f32 1.0, %v1374
  %v1376 = vsel %vm1361, %v1362, %v1373
  %v1377 = vsel %vm1361, %v1363, %v1375
  %1378 = vst [vmem:[%s12] sm:$0xff] %v1376
  %1379 = vst [vmem:[%s12 + $0x8] sm:$0xf] %v1377
  // Predicated region
  $region50: #{seq2seq_forward.1} parent=0 // pred_check
    _
  $region51: #{seq2seq_forward.1} parent=0 // pred_check_branch
    %1381 = sbr.rel (0) target = $region53
  $region52: #{seq2seq_forward.1} parent=0 // pred_region
    _
  $region53: #{seq2seq_forward.1} parent=0 // pred_fallthru
    _
  // Predicated region
  $region54: #{seq2seq_forward.1} parent=0 // pred_check
    _
  $region55: #{seq2seq_forward.1} parent=0 // pred_check_branch
    %1383 = sbr.rel (0) target = $region57
  $region56: #{seq2seq_forward.1} parent=0 // pred_region
    _
  $region57: #{seq2seq_forward.1} parent=0 // pred_fallthru
    _

</llo_original>
